<compile_context>
chip_gen: v6e
topology: v6e:2x2x1
jax: 0.10.0
libtpu: 0.0.40
codegen_flags: <defaults>
</compile_context>

<pallas_src>
import functools

import jax
import jax.numpy as jnp
import numpy as np
from jax.experimental import pallas as pl
from jax.experimental.pallas import tpu as pltpu


_KPAD1, _SPAD1 = 128, 256     # conv1: K = 5*5*3 = 75  -> 128, M = 15*15 = 225 -> 256
_KPAD2, _SPAD2 = 256, 128     # conv2: K = 5*5*6 = 150 -> 256, M = 7*7  = 49  -> 128


# ----------------------------------------------------------------------------
# Pallas kernels
# ----------------------------------------------------------------------------

def _conv_relu_pool_kernel(p_ref, w_ref, b_ref, o_ref, *, spad):
    """Lane-dense fused conv + bias + ReLU + 2x2 max-pool for one sample.

    p_ref : (1, Kpad, 4*spad) bf16 -- im2col patches, transposed (features on
            sublanes, pooled pixels on lanes), 4 pool parities stacked on lanes.
    w_ref : (Cout, Kpad) bf16
    b_ref : (Cout, 1)  f32
    o_ref : (1, Cout, spad) f32 -- pooled activation, pixels on lanes.
    """
    acc = jnp.dot(w_ref[...], p_ref[0], preferred_element_type=jnp.float32)
    a = jnp.maximum(jnp.maximum(acc[:, 0:spad], acc[:, spad:2 * spad]),
                    jnp.maximum(acc[:, 2 * spad:3 * spad], acc[:, 3 * spad:4 * spad]))
    o_ref[0] = jnp.maximum(a + b_ref[...], 0.0)


def _conv2_fc_kernel(p_ref, w2_ref, b2_ref, w1f_ref, b1f_ref, w2f_ref, b2f_ref, o_ref):
    """conv2 + ReLU + pool + fc1 + ReLU + fc2, fully fused, one sample per step.

    p_ref  : (1, 256, 512) bf16 -- conv2 patches (150 real features, 49 real pixels
                                    per parity, 4 parities stacked on lanes).
    w2_ref : (9, 256)  bf16     -- conv2 weight, transposed, K-padded.
    b2_ref : (9, 1)    f32
    w1f_ref: (9, 128, 128) bf16 -- fc1 weight as (channel, pixel_pad, hidden).
    b1f_ref: (1, 128)  f32
    w2f_ref: (128, 128) bf16    -- fc2 weight, output cols padded 5 -> 128.
    b2f_ref: (1, 128)  f32
    o_ref  : (1, 8, 128) f32    -- logits broadcast over 8 sublanes; row 0 is used.
    """
    s = _SPAD2
    acc = jnp.dot(w2_ref[...], p_ref[0], preferred_element_type=jnp.float32)   # (9, 512)
    a = jnp.maximum(jnp.maximum(acc[:, 0:s], acc[:, s:2 * s]),
                    jnp.maximum(acc[:, 2 * s:3 * s], acc[:, 3 * s:4 * s]))      # (9, 128)
    a = jnp.maximum(a + b2_ref[...], 0.0)      # pooled conv2 act; padded pixel cols
                                               # are garbage but hit zero fc1 rows.

    # fc1: contract over (channel, pixel) with no in-kernel flatten / transpose.
    h = b1f_ref[...]                                                            # (1, 128)
    for c in range(9):
        h = h + jnp.dot(a[c:c + 1, :].astype(jnp.bfloat16), w1f_ref[c],
                        preferred_element_type=jnp.float32)
    h = jnp.maximum(h, 0.0).astype(jnp.bfloat16)

    y = jnp.dot(h, w2f_ref[...], preferred_element_type=jnp.float32) + b2f_ref[...]
    o_ref[0] = jnp.broadcast_to(y, (8, 128))


# ----------------------------------------------------------------------------
# Wrappers / glue
# ----------------------------------------------------------------------------

def _vmem_limit_bytes():
    """Generation-aware scoped-VMEM cap (working set here is ~1 MiB anyway)."""
    try:
        cap = pltpu.get_tpu_info().vmem_capacity_bytes
        return int(min(cap // 2, 64 * 1024 * 1024))
    except Exception:
        return 32 * 1024 * 1024


def _build_patches_t(x_nhwc, k, pad, kpad, spad):
    """Transposed, parity-stacked im2col patches: (N, kpad, 4*spad) bf16.

    Row r = (dy*k + dx)*C + c (zero for r >= k*k*C); lane column g*spad + i*Wo + j
    holds padded-input pixel (2i + p + dy, 2j + q + dx, c) for pool parity g = 2p + q
    (columns past Ho*Wo are zero).
    """
    N, H, W, C = x_nhwc.shape
    Ho, Wo = H // 2, W // 2
    M, K = Ho * Wo, k * k * C
    xp = jnp.pad(x_nhwc, ((0, 0), (pad, pad), (pad, pad), (0, 0)))
    groups = []
    for p in range(2):
        for q in range(2):
            taps = [xp[:, p + dy:p + dy + 2 * Ho:2, q + dx:q + dx + 2 * Wo:2, :]
                    for dy in range(k) for dx in range(k)]
            t = jnp.stack(taps, axis=3)                       # (N, Ho, Wo, k*k, C)
            groups.append(t.reshape(N, M, K))
    g = jnp.stack(groups, axis=1)                             # (N, 4, M, K)
    g = jnp.transpose(g, (0, 3, 1, 2))                        # (N, K, 4, M)
    g = jnp.pad(g, ((0, 0), (0, kpad - K), (0, 0), (0, spad - M)))
    return g.reshape(N, kpad, 4 * spad).astype(jnp.bfloat16)


def conv1_relu_pool(p1, w1t, b1):
    """Fused conv1 + ReLU + 2x2 max-pool.  p1: (N, 128, 1024) -> (N, 6, 256) f32."""
    N, kpad, lanes = p1.shape
    cout = w1t.shape[0]
    spad = lanes // 4
    kern = functools.partial(_conv_relu_pool_kernel, spad=spad)
    flops = 2 * N * cout * kpad * lanes
    bytes_accessed = (N * (kpad * lanes * 2 + cout * spad * 4)
                      + cout * kpad * 2 + cout * 4)
    return pl.pallas_call(
        kern,
        out_shape=jax.ShapeDtypeStruct((N, cout, spad), jnp.float32),
        grid=(N,),
        in_specs=[pl.BlockSpec((1, kpad, lanes), lambda n: (n, 0, 0)),
                  pl.BlockSpec((cout, kpad), lambda n: (0, 0)),
                  pl.BlockSpec((cout, 1), lambda n: (0, 0))],
        out_specs=pl.BlockSpec((1, cout, spad), lambda n: (n, 0, 0)),
        compiler_params=pltpu.CompilerParams(
            dimension_semantics=("parallel",),
            vmem_limit_bytes=_vmem_limit_bytes()),
        cost_estimate=pl.CostEstimate(flops=flops, transcendentals=0,
                                      bytes_accessed=bytes_accessed),
    )(p1, w1t, b1)


def conv2_fc(p2, w2t, b2, w1f, b1f, w2f, b2f):
    """Fused conv2 + ReLU + pool + fc1 + ReLU + fc2.  p2: (N, 256, 512) -> (N, 8, 128)."""
    N = p2.shape[0]
    flops = N * (2 * 9 * _KPAD2 * 4 * _SPAD2 + 9 * 2 * 128 * 128 + 2 * 128 * 128)
    bytes_accessed = (N * (_KPAD2 * 4 * _SPAD2 * 2 + 8 * 128 * 4)
                      + (9 * _KPAD2 + 9 * 128 * 128 + 128 * 128) * 2
                      + (9 + 2 * 128) * 4)
    return pl.pallas_call(
        _conv2_fc_kernel,
        out_shape=jax.ShapeDtypeStruct((N, 8, 128), jnp.float32),
        grid=(N,),
        in_specs=[pl.BlockSpec((1, _KPAD2, 4 * _SPAD2), lambda n: (n, 0, 0)),
                  pl.BlockSpec((9, _KPAD2), lambda n: (0, 0)),
                  pl.BlockSpec((9, 1), lambda n: (0, 0)),
                  pl.BlockSpec((9, 128, 128), lambda n: (0, 0, 0)),
                  pl.BlockSpec((1, 128), lambda n: (0, 0)),
                  pl.BlockSpec((128, 128), lambda n: (0, 0)),
                  pl.BlockSpec((1, 128), lambda n: (0, 0))],
        out_specs=pl.BlockSpec((1, 8, 128), lambda n: (n, 0, 0)),
        compiler_params=pltpu.CompilerParams(
            dimension_semantics=("parallel",),
            vmem_limit_bytes=_vmem_limit_bytes()),
        cost_estimate=pl.CostEstimate(flops=flops, transcendentals=0,
                                      bytes_accessed=bytes_accessed),
    )(p2, w2t, b2, w1f, b1f, w2f, b2f)


def neuralnet_forward(x, prep):
    """Pallas implementation of NeuralNet.forward.  x: (N, 3*31*31) -> (N, 5)."""
    N = x.shape[0]
    xi = x.reshape(N, 3, 31, 31).transpose(0, 2, 3, 1)                    # NCHW -> NHWC
    p1 = _build_patches_t(xi, 5, 2, _KPAD1, _SPAD1)
    a1 = conv1_relu_pool(p1, prep["c1w"], prep["c1b"])                    # (N, 6, 256)
    a1 = a1[:, :, :15 * 15].reshape(N, 6, 15, 15).transpose(0, 2, 3, 1)   # (N,15,15,6)
    p2 = _build_patches_t(a1, 5, 2, _KPAD2, _SPAD2)
    y = conv2_fc(p2, prep["c2w"], prep["c2b"],
                 prep["f1w"], prep["f1b"], prep["f2w"], prep["f2b"])      # (N, 8, 128)
    return y[:, 0, :5]


# ----------------------------------------------------------------------------
# Parameter init (PyTorch layouts) + one-time layout prep for the kernels
# ----------------------------------------------------------------------------

def init_params(key):
    def u(k, shape, fan_in):
        bound = 1.0 / np.sqrt(fan_in)
        return jax.random.uniform(k, shape, jnp.float32, -bound, bound)

    ks = jax.random.split(key, 8)
    return {
        "w1": u(ks[0], (6, 3, 5, 5), 3 * 25),
        "b1": u(ks[1], (6,), 3 * 25),
        "w2": u(ks[2], (9, 6, 5, 5), 6 * 25),
        "b2": u(ks[3], (9,), 6 * 25),
        "fw1": u(ks[4], (128, 9 * 7 * 7), 9 * 7 * 7),
        "fb1": u(ks[5], (128,), 9 * 7 * 7),
        "fw2": u(ks[6], (5, 128), 128),
        "fb2": u(ks[7], (5,), 128),
    }


def prepare_params(params):
    """One-time layout prep: transpose / pad / cast weights for the kernels."""
    def conv_w_t(w, kpad):
        cout, cin, kh, kw = w.shape
        m = jnp.transpose(w, (2, 3, 1, 0)).reshape(kh * kw * cin, cout)   # rows (dy,dx,c)
        m = jnp.pad(m, ((0, kpad - m.shape[0]), (0, 0)))
        return m.T.astype(jnp.bfloat16)                                    # (cout, kpad)

    # fc1: fold the PyTorch NCHW flatten (c, i, j) into a (channel, pixel, hidden)
    # weight tensor so the kernel contracts per channel with no activation reshape.
    f1 = params["fw1"].reshape(128, 9, 49)                                 # (hid, c, i*7+j)
    f1 = jnp.transpose(f1, (1, 2, 0))                                      # (9, 49, 128)
    f1 = jnp.pad(f1, ((0, 0), (0, _SPAD2 - 49), (0, 0))).astype(jnp.bfloat16)

    f2 = jnp.pad(params["fw2"].T, ((0, 0), (0, 128 - 5))).astype(jnp.bfloat16)
    f2b = jnp.pad(params["fb2"], (0, 128 - 5)).reshape(1, 128)

    return {
        "c1w": conv_w_t(params["w1"], _KPAD1), "c1b": params["b1"].reshape(6, 1),
        "c2w": conv_w_t(params["w2"], _KPAD2), "c2b": params["b2"].reshape(9, 1),
        "f1w": f1, "f1b": params["fb1"].reshape(1, 128),
        "f2w": f2, "f2b": f2b,
    }


# ----------------------------------------------------------------------------
# Pure-JAX f32 reference (mirrors the PyTorch forward) for a correctness check
# ----------------------------------------------------------------------------

def reference_forward(x, params):
    N = x.shape[0]
    xi = x.reshape(N, 3, 31, 31).transpose(0, 2, 3, 1)

    def conv(z, w, b):
        out = jax.lax.conv_general_dilated(
            z, jnp.transpose(w, (2, 3, 1, 0)), (1, 1), [(2, 2), (2, 2)],
            dimension_numbers=("NHWC", "HWIO", "NHWC"))
        return jnp.maximum(out + b.reshape(1, 1, 1, -1), 0.0)

    def pool(z):
        return jax.lax.reduce_window(z, -jnp.inf, jax.lax.max,
                                     (1, 2, 2, 1), (1, 2, 2, 1), "VALID")

    y = pool(conv(xi, params["w1"], params["b1"]))
    y = pool(conv(y, params["w2"], params["b2"]))
    y = y.transpose(0, 3, 1, 2).reshape(N, -1)
    y = jnp.maximum(y @ params["fw1"].T + params["fb1"], 0.0)
    return y @ params["fw2"].T + params["fb2"]


if __name__ == "__main__":
    key = jax.random.PRNGKey(0)
    kx, kp = jax.random.split(key)
    params = init_params(kp)
    prep = prepare_params(params)

    N = 2
    x = jax.random.normal(kx, (N, 3 * 31 * 31), jnp.float32)

    fwd = jax.jit(neuralnet_forward)
    y = jax.block_until_ready(fwd(x, prep))
    assert y.shape == (N, 5) and y.dtype == jnp.float32

    ref = reference_forward(x, params)
    # bf16 MXU operands (f32 accumulation) -> compare with slightly loose tolerance.
    np.testing.assert_allclose(np.asarray(y), np.asarray(ref), rtol=2e-2, atol=2e-2)

    print("KERNEL_OK")
</pallas_src>

<mosaic_0001>
module attributes {stable_mosaic.version = 11 : i64} {
  func.func @_conv_relu_pool_kernel(%arg0: i32, %arg1: memref<1x128x1024xbf16, #tpu.memory_space<vmem>>, %arg2: memref<6x128xbf16, #tpu.memory_space<vmem>>, %arg3: memref<6x1xf32, #tpu.memory_space<vmem>>, %arg4: memref<1x6x256xf32, #tpu.memory_space<vmem>>) attributes {dimension_semantics = [#tpu.dimension_semantics<parallel>], iteration_bounds = array<i64: 2>, scalar_prefetch = 0 : i64, scratch_operands = 0 : i64, tpu.core_type = #tpu.core_type<tc>, window_params = [{transform_indices = @transform_0, window_bounds = array<i64: 1, 128, 1024>}, {pipeline_mode = #tpu.pipeline_mode<synchronous>, transform_indices = @transform_1, window_bounds = array<i64: 6, 128>}, {pipeline_mode = #tpu.pipeline_mode<synchronous>, transform_indices = @transform_2, window_bounds = array<i64: 6, 1>}, {transform_indices = @transform_3, window_bounds = array<i64: 1, 6, 256>}]} {
    %c0 = arith.constant 0 : index
    %c0_0 = arith.constant 0 : index
    %0 = vector.load %arg2[%c0, %c0_0] : memref<6x128xbf16, #tpu.memory_space<vmem>>, vector<6x128xbf16>
    %c0_1 = arith.constant 0 : index
    %c0_2 = arith.constant 0 : index
    %c0_3 = arith.constant 0 : index
    %1 = vector.load %arg1[%c0_1, %c0_2, %c0_3] : memref<1x128x1024xbf16, #tpu.memory_space<vmem>>, vector<1x128x1024xbf16>
    %2 = vector.shape_cast %1 : vector<1x128x1024xbf16> to vector<128x1024xbf16>
    %cst = arith.constant dense<0.000000e+00> : vector<6x1024xf32>
    %3 = tpu.matmul %0, %2, %cst {dimension_numbers = #tpu.dot_dimension_numbers<[1], [0], [0], [1], [0, 0, 1, 1], [], []>} : vector<6x128xbf16>, vector<128x1024xbf16>, vector<6x1024xf32> -> vector<6x1024xf32>
    %4 = vector.extract_strided_slice %3 {offsets = [0, 0], sizes = [6, 256], strides = [1, 1]} : vector<6x1024xf32> to vector<6x256xf32>
    %5 = vector.extract_strided_slice %3 {offsets = [0, 256], sizes = [6, 256], strides = [1, 1]} : vector<6x1024xf32> to vector<6x256xf32>
    %6 = arith.maximumf %4, %5 : vector<6x256xf32>
    %7 = vector.extract_strided_slice %3 {offsets = [0, 512], sizes = [6, 256], strides = [1, 1]} : vector<6x1024xf32> to vector<6x256xf32>
    %8 = vector.extract_strided_slice %3 {offsets = [0, 768], sizes = [6, 256], strides = [1, 1]} : vector<6x1024xf32> to vector<6x256xf32>
    %9 = arith.maximumf %7, %8 : vector<6x256xf32>
    %10 = arith.maximumf %6, %9 : vector<6x256xf32>
    %c0_4 = arith.constant 0 : index
    %c0_5 = arith.constant 0 : index
    %11 = vector.load %arg3[%c0_4, %c0_5] : memref<6x1xf32, #tpu.memory_space<vmem>>, vector<6x1xf32>
    %12 = vector.broadcast %11 : vector<6x1xf32> to vector<6x256xf32>
    %13 = arith.addf %10, %12 : vector<6x256xf32>
    %cst_6 = arith.constant 0.000000e+00 : f32
    %14 = vector.broadcast %cst_6 : f32 to vector<6x256xf32>
    %15 = arith.maximumf %13, %14 : vector<6x256xf32>
    %c0_7 = arith.constant 0 : index
    %c0_8 = arith.constant 0 : index
    %c0_9 = arith.constant 0 : index
    %16 = vector.load %arg4[%c0_7, %c0_8, %c0_9] : memref<1x6x256xf32, #tpu.memory_space<vmem>>, vector<1x6x256xf32>
    %17 = vector.shape_cast %16 : vector<1x6x256xf32> to vector<6x256xf32>
    %18 = vector.shape_cast %15 : vector<6x256xf32> to vector<1x6x256xf32>
    tpu.vector_store %arg4[%c0_7, %c0_8, %c0_9], %18 {strides = array<i32>} : memref<1x6x256xf32, #tpu.memory_space<vmem>>, vector<1x6x256xf32>,
    return
  }
  func.func @transform_0(%arg0: i32) -> (i32, i32, i32) {
    %c0_i32 = arith.constant 0 : i32
    %c0_i32_0 = arith.constant 0 : i32
    %c0_i32_1 = arith.constant 0 : i32
    return %arg0, %c0_i32, %c0_i32_0 : i32, i32, i32
  }
  func.func @transform_1(%arg0: i32) -> (i32, i32) {
    %c0_i32 = arith.constant 0 : i32
    %c0_i32_0 = arith.constant 0 : i32
    %c0_i32_1 = arith.constant 0 : i32
    return %c0_i32, %c0_i32_0 : i32, i32
  }
  func.func @transform_2(%arg0: i32) -> (i32, i32) {
    %c0_i32 = arith.constant 0 : i32
    %c0_i32_0 = arith.constant 0 : i32
    %c0_i32_1 = arith.constant 0 : i32
    return %c0_i32, %c0_i32_0 : i32, i32
  }
  func.func @transform_3(%arg0: i32) -> (i32, i32, i32) {
    %c0_i32 = arith.constant 0 : i32
    %c0_i32_0 = arith.constant 0 : i32
    %c0_i32_1 = arith.constant 0 : i32
    return %arg0, %c0_i32, %c0_i32_0 : i32, i32, i32
  }
}

module attributes {stable_mosaic.version = 11 : i64} {
  func.func @_conv2_fc_kernel(%arg0: i32, %arg1: memref<1x256x512xbf16, #tpu.memory_space<vmem>>, %arg2: memref<9x256xbf16, #tpu.memory_space<vmem>>, %arg3: memref<9x1xf32, #tpu.memory_space<vmem>>, %arg4: memref<9x128x128xbf16, #tpu.memory_space<vmem>>, %arg5: memref<1x128xf32, #tpu.memory_space<vmem>>, %arg6: memref<128x128xbf16, #tpu.memory_space<vmem>>, %arg7: memref<1x128xf32, #tpu.memory_space<vmem>>, %arg8: memref<1x8x128xf32, #tpu.memory_space<vmem>>) attributes {dimension_semantics = [#tpu.dimension_semantics<parallel>], iteration_bounds = array<i64: 2>, scalar_prefetch = 0 : i64, scratch_operands = 0 : i64, tpu.core_type = #tpu.core_type<tc>, window_params = [{transform_indices = @transform_0, window_bounds = array<i64: 1, 256, 512>}, {pipeline_mode = #tpu.pipeline_mode<synchronous>, transform_indices = @transform_1, window_bounds = array<i64: 9, 256>}, {pipeline_mode = #tpu.pipeline_mode<synchronous>, transform_indices = @transform_2, window_bounds = array<i64: 9, 1>}, {pipeline_mode = #tpu.pipeline_mode<synchronous>, transform_indices = @transform_3, window_bounds = array<i64: 9, 128, 128>}, {pipeline_mode = #tpu.pipeline_mode<synchronous>, transform_indices = @transform_4, window_bounds = array<i64: 1, 128>}, {pipeline_mode = #tpu.pipeline_mode<synchronous>, transform_indices = @transform_5, window_bounds = array<i64: 128, 128>}, {pipeline_mode = #tpu.pipeline_mode<synchronous>, transform_indices = @transform_6, window_bounds = array<i64: 1, 128>}, {transform_indices = @transform_7, window_bounds = array<i64: 1, 8, 128>}]} {
    %c0 = arith.constant 0 : index
    %c0_0 = arith.constant 0 : index
    %0 = vector.load %arg2[%c0, %c0_0] : memref<9x256xbf16, #tpu.memory_space<vmem>>, vector<9x256xbf16>
    %c0_1 = arith.constant 0 : index
    %c0_2 = arith.constant 0 : index
    %c0_3 = arith.constant 0 : index
    %1 = vector.load %arg1[%c0_1, %c0_2, %c0_3] : memref<1x256x512xbf16, #tpu.memory_space<vmem>>, vector<1x256x512xbf16>
    %2 = vector.shape_cast %1 : vector<1x256x512xbf16> to vector<256x512xbf16>
    %cst = arith.constant dense<0.000000e+00> : vector<9x512xf32>
    %3 = tpu.matmul %0, %2, %cst {dimension_numbers = #tpu.dot_dimension_numbers<[1], [0], [0], [1], [0, 0, 1, 1], [], []>} : vector<9x256xbf16>, vector<256x512xbf16>, vector<9x512xf32> -> vector<9x512xf32>
    %4 = vector.extract_strided_slice %3 {offsets = [0, 0], sizes = [9, 128], strides = [1, 1]} : vector<9x512xf32> to vector<9x128xf32>
    %5 = vector.extract_strided_slice %3 {offsets = [0, 128], sizes = [9, 128], strides = [1, 1]} : vector<9x512xf32> to vector<9x128xf32>
    %6 = arith.maximumf %4, %5 : vector<9x128xf32>
    %7 = vector.extract_strided_slice %3 {offsets = [0, 256], sizes = [9, 128], strides = [1, 1]} : vector<9x512xf32> to vector<9x128xf32>
    %8 = vector.extract_strided_slice %3 {offsets = [0, 384], sizes = [9, 128], strides = [1, 1]} : vector<9x512xf32> to vector<9x128xf32>
    %9 = arith.maximumf %7, %8 : vector<9x128xf32>
    %10 = arith.maximumf %6, %9 : vector<9x128xf32>
    %c0_4 = arith.constant 0 : index
    %c0_5 = arith.constant 0 : index
    %11 = vector.load %arg3[%c0_4, %c0_5] : memref<9x1xf32, #tpu.memory_space<vmem>>, vector<9x1xf32>
    %12 = vector.broadcast %11 : vector<9x1xf32> to vector<9x128xf32>
    %13 = arith.addf %10, %12 : vector<9x128xf32>
    %cst_6 = arith.constant 0.000000e+00 : f32
    %14 = vector.broadcast %cst_6 : f32 to vector<9x128xf32>
    %15 = arith.maximumf %13, %14 : vector<9x128xf32>
    %c0_7 = arith.constant 0 : index
    %c0_8 = arith.constant 0 : index
    %16 = vector.load %arg5[%c0_7, %c0_8] : memref<1x128xf32, #tpu.memory_space<vmem>>, vector<1x128xf32>
    %17 = vector.extract_strided_slice %15 {offsets = [0, 0], sizes = [1, 128], strides = [1, 1]} : vector<9x128xf32> to vector<1x128xf32>
    %18 = arith.truncf %17 : vector<1x128xf32> to vector<1x128xbf16>
    %c0_9 = arith.constant 0 : index
    %c0_10 = arith.constant 0 : index
    %c0_11 = arith.constant 0 : index
    %19 = vector.load %arg4[%c0_9, %c0_10, %c0_11] : memref<9x128x128xbf16, #tpu.memory_space<vmem>>, vector<1x128x128xbf16>
    %20 = vector.shape_cast %19 : vector<1x128x128xbf16> to vector<128x128xbf16>
    %cst_12 = arith.constant dense<0.000000e+00> : vector<1x128xf32>
    %21 = tpu.matmul %18, %20, %cst_12 {dimension_numbers = #tpu.dot_dimension_numbers<[1], [0], [0], [1], [0, 0, 1, 1], [], []>} : vector<1x128xbf16>, vector<128x128xbf16>, vector<1x128xf32> -> vector<1x128xf32>
    %22 = arith.addf %16, %21 : vector<1x128xf32>
    %23 = vector.extract_strided_slice %15 {offsets = [1, 0], sizes = [1, 128], strides = [1, 1]} : vector<9x128xf32> to vector<1x128xf32>
    %24 = arith.truncf %23 : vector<1x128xf32> to vector<1x128xbf16>
    %c1 = arith.constant 1 : index
    %c0_13 = arith.constant 0 : index
    %c0_14 = arith.constant 0 : index
    %25 = vector.load %arg4[%c1, %c0_13, %c0_14] : memref<9x128x128xbf16, #tpu.memory_space<vmem>>, vector<1x128x128xbf16>
    %26 = vector.shape_cast %25 : vector<1x128x128xbf16> to vector<128x128xbf16>
    %cst_15 = arith.constant dense<0.000000e+00> : vector<1x128xf32>
    %27 = tpu.matmul %24, %26, %cst_15 {dimension_numbers = #tpu.dot_dimension_numbers<[1], [0], [0], [1], [0, 0, 1, 1], [], []>} : vector<1x128xbf16>, vector<128x128xbf16>, vector<1x128xf32> -> vector<1x128xf32>
    %28 = arith.addf %22, %27 : vector<1x128xf32>
    %29 = vector.extract_strided_slice %15 {offsets = [2, 0], sizes = [1, 128], strides = [1, 1]} : vector<9x128xf32> to vector<1x128xf32>
    %30 = arith.truncf %29 : vector<1x128xf32> to vector<1x128xbf16>
    %c2 = arith.constant 2 : index
    %c0_16 = arith.constant 0 : index
    %c0_17 = arith.constant 0 : index
    %31 = vector.load %arg4[%c2, %c0_16, %c0_17] : memref<9x128x128xbf16, #tpu.memory_space<vmem>>, vector<1x128x128xbf16>
    %32 = vector.shape_cast %31 : vector<1x128x128xbf16> to vector<128x128xbf16>
    %cst_18 = arith.constant dense<0.000000e+00> : vector<1x128xf32>
    %33 = tpu.matmul %30, %32, %cst_18 {dimension_numbers = #tpu.dot_dimension_numbers<[1], [0], [0], [1], [0, 0, 1, 1], [], []>} : vector<1x128xbf16>, vector<128x128xbf16>, vector<1x128xf32> -> vector<1x128xf32>
    %34 = arith.addf %28, %33 : vector<1x128xf32>
    %35 = vector.extract_strided_slice %15 {offsets = [3, 0], sizes = [1, 128], strides = [1, 1]} : vector<9x128xf32> to vector<1x128xf32>
    %36 = arith.truncf %35 : vector<1x128xf32> to vector<1x128xbf16>
    %c3 = arith.constant 3 : index
    %c0_19 = arith.constant 0 : index
    %c0_20 = arith.constant 0 : index
    %37 = vector.load %arg4[%c3, %c0_19, %c0_20] : memref<9x128x128xbf16, #tpu.memory_space<vmem>>, vector<1x128x128xbf16>
    %38 = vector.shape_cast %37 : vector<1x128x128xbf16> to vector<128x128xbf16>
    %cst_21 = arith.constant dense<0.000000e+00> : vector<1x128xf32>
    %39 = tpu.matmul %36, %38, %cst_21 {dimension_numbers = #tpu.dot_dimension_numbers<[1], [0], [0], [1], [0, 0, 1, 1], [], []>} : vector<1x128xbf16>, vector<128x128xbf16>, vector<1x128xf32> -> vector<1x128xf32>
    %40 = arith.addf %34, %39 : vector<1x128xf32>
    %41 = vector.extract_strided_slice %15 {offsets = [4, 0], sizes = [1, 128], strides = [1, 1]} : vector<9x128xf32> to vector<1x128xf32>
    %42 = arith.truncf %41 : vector<1x128xf32> to vector<1x128xbf16>
    %c4 = arith.constant 4 : index
    %c0_22 = arith.constant 0 : index
    %c0_23 = arith.constant 0 : index
    %43 = vector.load %arg4[%c4, %c0_22, %c0_23] : memref<9x128x128xbf16, #tpu.memory_space<vmem>>, vector<1x128x128xbf16>
    %44 = vector.shape_cast %43 : vector<1x128x128xbf16> to vector<128x128xbf16>
    %cst_24 = arith.constant dense<0.000000e+00> : vector<1x128xf32>
    %45 = tpu.matmul %42, %44, %cst_24 {dimension_numbers = #tpu.dot_dimension_numbers<[1], [0], [0], [1], [0, 0, 1, 1], [], []>} : vector<1x128xbf16>, vector<128x128xbf16>, vector<1x128xf32> -> vector<1x128xf32>
    %46 = arith.addf %40, %45 : vector<1x128xf32>
    %47 = vector.extract_strided_slice %15 {offsets = [5, 0], sizes = [1, 128], strides = [1, 1]} : vector<9x128xf32> to vector<1x128xf32>
    %48 = arith.truncf %47 : vector<1x128xf32> to vector<1x128xbf16>
    %c5 = arith.constant 5 : index
    %c0_25 = arith.constant 0 : index
    %c0_26 = arith.constant 0 : index
    %49 = vector.load %arg4[%c5, %c0_25, %c0_26] : memref<9x128x128xbf16, #tpu.memory_space<vmem>>, vector<1x128x128xbf16>
    %50 = vector.shape_cast %49 : vector<1x128x128xbf16> to vector<128x128xbf16>
    %cst_27 = arith.constant dense<0.000000e+00> : vector<1x128xf32>
    %51 = tpu.matmul %48, %50, %cst_27 {dimension_numbers = #tpu.dot_dimension_numbers<[1], [0], [0], [1], [0, 0, 1, 1], [], []>} : vector<1x128xbf16>, vector<128x128xbf16>, vector<1x128xf32> -> vector<1x128xf32>
    %52 = arith.addf %46, %51 : vector<1x128xf32>
    %53 = vector.extract_strided_slice %15 {offsets = [6, 0], sizes = [1, 128], strides = [1, 1]} : vector<9x128xf32> to vector<1x128xf32>
    %54 = arith.truncf %53 : vector<1x128xf32> to vector<1x128xbf16>
    %c6 = arith.constant 6 : index
    %c0_28 = arith.constant 0 : index
    %c0_29 = arith.constant 0 : index
    %55 = vector.load %arg4[%c6, %c0_28, %c0_29] : memref<9x128x128xbf16, #tpu.memory_space<vmem>>, vector<1x128x128xbf16>
    %56 = vector.shape_cast %55 : vector<1x128x128xbf16> to vector<128x128xbf16>
    %cst_30 = arith.constant dense<0.000000e+00> : vector<1x128xf32>
    %57 = tpu.matmul %54, %56, %cst_30 {dimension_numbers = #tpu.dot_dimension_numbers<[1], [0], [0], [1], [0, 0, 1, 1], [], []>} : vector<1x128xbf16>, vector<128x128xbf16>, vector<1x128xf32> -> vector<1x128xf32>
    %58 = arith.addf %52, %57 : vector<1x128xf32>
    %59 = vector.extract_strided_slice %15 {offsets = [7, 0], sizes = [1, 128], strides = [1, 1]} : vector<9x128xf32> to vector<1x128xf32>
    %60 = arith.truncf %59 : vector<1x128xf32> to vector<1x128xbf16>
    %c7 = arith.constant 7 : index
    %c0_31 = arith.constant 0 : index
    %c0_32 = arith.constant 0 : index
    %61 = vector.load %arg4[%c7, %c0_31, %c0_32] : memref<9x128x128xbf16, #tpu.memory_space<vmem>>, vector<1x128x128xbf16>
    %62 = vector.shape_cast %61 : vector<1x128x128xbf16> to vector<128x128xbf16>
    %cst_33 = arith.constant dense<0.000000e+00> : vector<1x128xf32>
    %63 = tpu.matmul %60, %62, %cst_33 {dimension_numbers = #tpu.dot_dimension_numbers<[1], [0], [0], [1], [0, 0, 1, 1], [], []>} : vector<1x128xbf16>, vector<128x128xbf16>, vector<1x128xf32> -> vector<1x128xf32>
    %64 = arith.addf %58, %63 : vector<1x128xf32>
    %65 = vector.extract_strided_slice %15 {offsets = [8, 0], sizes = [1, 128], strides = [1, 1]} : vector<9x128xf32> to vector<1x128xf32>
    %66 = arith.truncf %65 : vector<1x128xf32> to vector<1x128xbf16>
    %c8 = arith.constant 8 : index
    %c0_34 = arith.constant 0 : index
    %c0_35 = arith.constant 0 : index
    %67 = vector.load %arg4[%c8, %c0_34, %c0_35] : memref<9x128x128xbf16, #tpu.memory_space<vmem>>, vector<1x128x128xbf16>
    %68 = vector.shape_cast %67 : vector<1x128x128xbf16> to vector<128x128xbf16>
    %cst_36 = arith.constant dense<0.000000e+00> : vector<1x128xf32>
    %69 = tpu.matmul %66, %68, %cst_36 {dimension_numbers = #tpu.dot_dimension_numbers<[1], [0], [0], [1], [0, 0, 1, 1], [], []>} : vector<1x128xbf16>, vector<128x128xbf16>, vector<1x128xf32> -> vector<1x128xf32>
    %70 = arith.addf %64, %69 : vector<1x128xf32>
    %cst_37 = arith.constant 0.000000e+00 : f32
    %71 = vector.broadcast %cst_37 : f32 to vector<1x128xf32>
    %72 = arith.maximumf %70, %71 : vector<1x128xf32>
    %73 = arith.truncf %72 : vector<1x128xf32> to vector<1x128xbf16>
    %c0_38 = arith.constant 0 : index
    %c0_39 = arith.constant 0 : index
    %74 = vector.load %arg6[%c0_38, %c0_39] : memref<128x128xbf16, #tpu.memory_space<vmem>>, vector<128x128xbf16>
    %cst_40 = arith.constant dense<0.000000e+00> : vector<1x128xf32>
    %75 = tpu.matmul %73, %74, %cst_40 {dimension_numbers = #tpu.dot_dimension_numbers<[1], [0], [0], [1], [0, 0, 1, 1], [], []>} : vector<1x128xbf16>, vector<128x128xbf16>, vector<1x128xf32> -> vector<1x128xf32>
    %c0_41 = arith.constant 0 : index
    %c0_42 = arith.constant 0 : index
    %76 = vector.load %arg7[%c0_41, %c0_42] : memref<1x128xf32, #tpu.memory_space<vmem>>, vector<1x128xf32>
    %77 = arith.addf %75, %76 : vector<1x128xf32>
    %78 = vector.shape_cast %77 : vector<1x128xf32> to vector<1x128xf32>
    %79 = vector.broadcast %78 : vector<1x128xf32> to vector<8x128xf32>
    %c0_43 = arith.constant 0 : index
    %c0_44 = arith.constant 0 : index
    %c0_45 = arith.constant 0 : index
    %80 = vector.load %arg8[%c0_43, %c0_44, %c0_45] : memref<1x8x128xf32, #tpu.memory_space<vmem>>, vector<1x8x128xf32>
    %81 = vector.shape_cast %80 : vector<1x8x128xf32> to vector<8x128xf32>
    %82 = vector.shape_cast %79 : vector<8x128xf32> to vector<1x8x128xf32>
    tpu.vector_store %arg8[%c0_43, %c0_44, %c0_45], %82 {strides = array<i32>} : memref<1x8x128xf32, #tpu.memory_space<vmem>>, vector<1x8x128xf32>,
    return
  }
  func.func @transform_0(%arg0: i32) -> (i32, i32, i32) {
    %c0_i32 = arith.constant 0 : i32
    %c0_i32_0 = arith.constant 0 : i32
    %c0_i32_1 = arith.constant 0 : i32
    return %arg0, %c0_i32, %c0_i32_0 : i32, i32, i32
  }
  func.func @transform_1(%arg0: i32) -> (i32, i32) {
    %c0_i32 = arith.constant 0 : i32
    %c0_i32_0 = arith.constant 0 : i32
    %c0_i32_1 = arith.constant 0 : i32
    return %c0_i32, %c0_i32_0 : i32, i32
  }
  func.func @transform_2(%arg0: i32) -> (i32, i32) {
    %c0_i32 = arith.constant 0 : i32
    %c0_i32_0 = arith.constant 0 : i32
    %c0_i32_1 = arith.constant 0 : i32
    return %c0_i32, %c0_i32_0 : i32, i32
  }
  func.func @transform_3(%arg0: i32) -> (i32, i32, i32) {
    %c0_i32 = arith.constant 0 : i32
    %c0_i32_0 = arith.constant 0 : i32
    %c0_i32_1 = arith.constant 0 : i32
    %c0_i32_2 = arith.constant 0 : i32
    return %c0_i32, %c0_i32_0, %c0_i32_1 : i32, i32, i32
  }
  func.func @transform_4(%arg0: i32) -> (i32, i32) {
    %c0_i32 = arith.constant 0 : i32
    %c0_i32_0 = arith.constant 0 : i32
    %c0_i32_1 = arith.constant 0 : i32
    return %c0_i32, %c0_i32_0 : i32, i32
  }
  func.func @transform_5(%arg0: i32) -> (i32, i32) {
    %c0_i32 = arith.constant 0 : i32
    %c0_i32_0 = arith.constant 0 : i32
    %c0_i32_1 = arith.constant 0 : i32
    return %c0_i32, %c0_i32_0 : i32, i32
  }
  func.func @transform_6(%arg0: i32) -> (i32, i32) {
    %c0_i32 = arith.constant 0 : i32
    %c0_i32_0 = arith.constant 0 : i32
    %c0_i32_1 = arith.constant 0 : i32
    return %c0_i32, %c0_i32_0 : i32, i32
  }
  func.func @transform_7(%arg0: i32) -> (i32, i32, i32) {
    %c0_i32 = arith.constant 0 : i32
    %c0_i32_0 = arith.constant 0 : i32
    %c0_i32_1 = arith.constant 0 : i32
    return %arg0, %c0_i32, %c0_i32_0 : i32, i32, i32
  }
}

</mosaic_0001>

<llo_original>
// kernel: neuralnet_forward.2
$region0: #{neuralnet_forward.2}
  #allocation0 [shape = 'u32[]', space=smem, size = 0x4, offset = 0x4, fixed_abs, tag = 'smem constant byte address 0x4 - core index']
  #allocation1 [shape = 'u32[144,128]{1,0:T(1,128)}', space=vmem, size = 0x12000, scoped, tag = 'internal scratch']
  %s0 = inlined_call_operand.vmem [shape: bf16[2,128,1024], index: 0, kind: input, shape index: {}]
  %s1 = inlined_call_operand.vmem [shape: bf16[6,128], index: 1, kind: input, shape index: {}]
  %s2 = inlined_call_operand.vmem [shape: f32[6,1], index: 2, kind: input, shape index: {}]
  %s3 = inlined_call_operand.vmem [shape: f32[2,6,256], index: 3, kind: output, shape index: {}]
  %s4 = sld [smem:[#allocation0]]
  $region45: #{neuralnet_forward.2} parent=0
    _
  %s6 = ssub.s32 1, %s4
  %s7 = scalar_select 0, %s6, %s4
  loop: start=0, step=1, limit=4
  $region2: #{neuralnet_forward.2} parent=0 // loop_pre_header
    _
  $region3: #{neuralnet_forward.2} parent=0 // loop_header
    %s9 = sphi 0, %s13
    %p10 = scmp.ge.s32.totalorder %s9, 4
    %s19 = sphi 0, %s21
    %s22 = sphi 0, %s19
    %s23 = sphi 0, %s22
    %s39 = sphi 0, %s23
    %s43 = sphi 0, %s43
    %s45 = sphi 0, %s43
    %s46 = sphi 0, %s45
    %s60 = sphi 0, %s46
    %s64 = sphi 0, %s64
    %s66 = sphi 0, %s64
    %s67 = sphi 0, %s66
    %s81 = sphi 0, %s67
    %s87 = sphi 0, %s89
    %s90 = sphi 0, %s87
    %s91 = sphi 0, %s90
    %s107 = sphi 0, %s91
  $region4: #{neuralnet_forward.2} parent=0 // loop_header_branch
    %12 = sbr.rel (%p10) target = $region8
  $region5: #{neuralnet_forward.2} parent=0 // loop_body
    %s14 = ssub.s32 %s9, 1
    %s15 = ssub.s32 %s9, 2
    %s16 = sadd.s32 %s9, 1
    %s17 = ssub.s32 %s9, %s16
    %p18 = scmp.eq.s32.totalorder %s17, 0
    %s20 = sadd.s32 %s19, 1
    %s21 = scalar_select %p18, %s19, %s20
    %p24 = pneg %p18
    %p25 = scmp.eq.s32.totalorder %s9, 1
    %p26 = por %p24, %p25
    %p27 = scmp.ne.s32.totalorder %s19, %s22
    %p28 = scmp.eq.s32.totalorder %s9, 0
    %p29 = por %p27, %p28
    %p30 = scmp.ne.s32.totalorder %s19, %s22
    %p31 = scmp.eq.s32.totalorder %s14, 1
    %p32 = por %p30, %p31
    %p33 = scmp.ne.s32.totalorder %s22, %s23
    %p34 = scmp.eq.s32.totalorder %s14, 0
    %p35 = por %p33, %p34
    %p36 = scmp.ne.s32.totalorder %s22, %s23
    %p37 = scmp.eq.s32.totalorder %s15, 1
    %p38 = por %p36, %p37
    %p40 = scmp.ne.s32.totalorder %s23, %s39
    %p41 = scmp.eq.s32.totalorder %s15, 0
    %p42 = por %p40, %p41
    %s44 = sadd.s32 %s43, 1
    %p47 = scmp.eq.s32.totalorder %s9, 1
    %p48 = scmp.ne.s32.totalorder %s43, %s45
    %p49 = scmp.eq.s32.totalorder %s9, 0
    %p50 = por %p48, %p49
    %p51 = scmp.ne.s32.totalorder %s43, %s45
    %p52 = scmp.eq.s32.totalorder %s14, 1
    %p53 = por %p51, %p52
    %p54 = scmp.ne.s32.totalorder %s45, %s46
    %p55 = scmp.eq.s32.totalorder %s14, 0
    %p56 = por %p54, %p55
    %p57 = scmp.ne.s32.totalorder %s45, %s46
    %p58 = scmp.eq.s32.totalorder %s15, 1
    %p59 = por %p57, %p58
    %p61 = scmp.ne.s32.totalorder %s46, %s60
    %p62 = scmp.eq.s32.totalorder %s15, 0
    %p63 = por %p61, %p62
    %s65 = sadd.s32 %s64, 1
    %p68 = scmp.eq.s32.totalorder %s9, 1
    %p69 = scmp.ne.s32.totalorder %s64, %s66
    %p70 = scmp.eq.s32.totalorder %s9, 0
    %p71 = por %p69, %p70
    %p72 = scmp.ne.s32.totalorder %s64, %s66
    %p73 = scmp.eq.s32.totalorder %s14, 1
    %p74 = por %p72, %p73
    %p75 = scmp.ne.s32.totalorder %s66, %s67
    %p76 = scmp.eq.s32.totalorder %s14, 0
    %p77 = por %p75, %p76
    %p78 = scmp.ne.s32.totalorder %s66, %s67
    %p79 = scmp.eq.s32.totalorder %s15, 1
    %p80 = por %p78, %p79
    %p82 = scmp.ne.s32.totalorder %s67, %s81
    %p83 = scmp.eq.s32.totalorder %s15, 0
    %p84 = por %p82, %p83
    %s85 = ssub.s32 %s9, %s16
    %p86 = scmp.eq.s32.totalorder %s85, 0
    %s88 = sadd.s32 %s87, 1
    %s89 = scalar_select %p86, %s87, %s88
    %p92 = pneg %p86
    %p93 = scmp.eq.s32.totalorder %s9, 1
    %p94 = por %p92, %p93
    %p95 = scmp.ne.s32.totalorder %s87, %s90
    %p96 = scmp.eq.s32.totalorder %s9, 0
    %p97 = por %p95, %p96
    %p98 = scmp.ne.s32.totalorder %s87, %s90
    %p99 = scmp.eq.s32.totalorder %s14, 1
    %p100 = por %p98, %p99
    %p101 = scmp.ne.s32.totalorder %s90, %s91
    %p102 = scmp.eq.s32.totalorder %s14, 0
    %p103 = por %p101, %p102
    %p104 = scmp.ne.s32.totalorder %s90, %s91
    %p105 = scmp.eq.s32.totalorder %s15, 1
    %p106 = por %p104, %p105
    %p108 = scmp.ne.s32.totalorder %s91, %s107
    %p109 = scmp.eq.s32.totalorder %s15, 0
    %p110 = por %p108, %p109
    %p111 = scmp.le.s32.totalorder 1, %s9
    %p112 = scmp.lt.s32.totalorder %s9, 3
    %p113 = pnand %p111, %p112
    %p114 = pneg %p113
    // Predicated region
    $region9: #{neuralnet_forward.2} parent=5 // pred_check
      _
    $region10: #{neuralnet_forward.2} parent=5 // pred_check_branch
      %116 = sbr.rel (%p113) target = $region12
    $region11: #{neuralnet_forward.2} parent=5 // pred_region
      %s117 = ssub.s32 %s9, 1
      // Predicated region
      $region13: #{neuralnet_forward.2} parent=11 // pred_check
        %p118 = pneg %p56
      $region14: #{neuralnet_forward.2} parent=11 // pred_check_branch
        %120 = sbr.rel (%p118) target = $region16
      $region15: #{neuralnet_forward.2} parent=11 // pred_region
        _
      $region16: #{neuralnet_forward.2} parent=11 // pred_fallthru
        _
      // Predicated region
      $region17: #{neuralnet_forward.2} parent=11 // pred_check
        %p121 = pneg %p77
      $region18: #{neuralnet_forward.2} parent=11 // pred_check_branch
        %123 = sbr.rel (%p121) target = $region20
      $region19: #{neuralnet_forward.2} parent=11 // pred_region
        _
      $region20: #{neuralnet_forward.2} parent=11 // pred_fallthru
        _
    $region12: #{neuralnet_forward.2} parent=5 // pred_fallthru
      _
    %p124 = scmp.lt.s32.totalorder %s9, 2
    // Predicated region
    $region21: #{neuralnet_forward.2} parent=5 // pred_check
      %p125 = pneg %p124
    $region22: #{neuralnet_forward.2} parent=5 // pred_check_branch
      %127 = sbr.rel (%p125) target = $region24
    $region23: #{neuralnet_forward.2} parent=5 // pred_region
      // Predicated region
      $region25: #{neuralnet_forward.2} parent=23 // pred_check
        %p128 = pneg %p29
      $region26: #{neuralnet_forward.2} parent=23 // pred_check_branch
        %130 = sbr.rel (%p128) target = $region28
      $region27: #{neuralnet_forward.2} parent=23 // pred_region
        %p131 = scmp.lt.s32.totalorder %s9, 1
        %s132 = scalar_select %p131, %s9, 1
        %s133 = smul.addr %s132, 128
        %s134 = smul.addr %s133, 4
        %s135 = scalar_lea.vmem %s0, %s134
      $region28: #{neuralnet_forward.2} parent=23 // pred_fallthru
        _
    $region24: #{neuralnet_forward.2} parent=5 // pred_fallthru
      _
    %p136 = scmp.le.s32.totalorder 1, %s9
    %p137 = scmp.lt.s32.totalorder %s9, 3
    %p138 = pnand %p136, %p137
    %p139 = pneg %p138
    // Predicated region
    $region29: #{neuralnet_forward.2} parent=5 // pred_check
      _
    $region30: #{neuralnet_forward.2} parent=5 // pred_check_branch
      %141 = sbr.rel (%p138) target = $region32
    $region31: #{neuralnet_forward.2} parent=5 // pred_region
      %s142 = ssub.s32 %s9, 1
      %p143 = scmp.lt.s32.totalorder %s14, 1
      %s144 = scalar_select %p143, %s14, 1
      %s145 = smul.addr %s144, 128
      %s146 = smul.addr %s145, 4
      %s147 = scalar_lea.vmem %s0, %s146
      %p148 = pneg %p35
      %p149 = pneg %p32
      %p150 = pneg %p56
      %p151 = pneg %p53
      %p152 = pneg %p77
      %p153 = pneg %p74
      %p154 = pneg %p103
      %p155 = pneg %p100
      %p156 = scmp.lt.s32.totalorder %s14, 1
      %s157 = scalar_select %p156, %s14, 1
      %s158 = smul.addr %s157, 2
      %s159 = smul.addr %s158, 8
      %s160 = scalar_lea.vmem %s3, %s159
      %p161 = scmp.lt.s32.totalorder %s14, 1
      %s162 = scalar_select %p161, %s14, 1
      %s163 = smul.addr %s162, 128
      %s164 = smul.addr %s163, 4
      %s165 = scalar_lea.vmem %s0, %s164
      %p166 = scmp.lt.s32.totalorder %s14, 1
      %s167 = scalar_select %p166, %s14, 1
      %s168 = smul.addr %s167, 2
      %s169 = smul.addr %s168, 8
      %s170 = scalar_lea.vmem %s3, %s169
      %v172 = vld [vmem:[%s1] sm:$0x7]
      %v173 = vld [vmem:[%s165] sm:$0xff]
      %v174 = vld [vmem:[%s165 + $0x8] sm:$0xff]
      %v175 = vld [vmem:[%s165 + $0x10] sm:$0xff]
      %v176 = vld [vmem:[%s165 + $0x18] sm:$0xff]
      %v177 = vld [vmem:[%s165 + $0x20] sm:$0xff]
      %v178 = vld [vmem:[%s165 + $0x28] sm:$0xff]
      %v179 = vld [vmem:[%s165 + $0x30] sm:$0xff]
      %v180 = vld [vmem:[%s165 + $0x38] sm:$0xff]
      %v181 = vld [vmem:[%s165 + $0x40] sm:$0xff]
      %v182 = vld [vmem:[%s165 + $0x48] sm:$0xff]
      %v183 = vld [vmem:[%s165 + $0x50] sm:$0xff]
      %v184 = vld [vmem:[%s165 + $0x58] sm:$0xff]
      %v185 = vld [vmem:[%s165 + $0x60] sm:$0xff]
      %v186 = vld [vmem:[%s165 + $0x68] sm:$0xff]
      %v187 = vld [vmem:[%s165 + $0x70] sm:$0xff]
      %v188 = vld [vmem:[%s165 + $0x78] sm:$0xff]
      %v189 = vld [vmem:[%s165 + $0x80] sm:$0xff]
      %v190 = vld [vmem:[%s165 + $0x88] sm:$0xff]
      %v191 = vld [vmem:[%s165 + $0x90] sm:$0xff]
      %v192 = vld [vmem:[%s165 + $0x98] sm:$0xff]
      %v193 = vld [vmem:[%s165 + $0xa0] sm:$0xff]
      %v194 = vld [vmem:[%s165 + $0xa8] sm:$0xff]
      %v195 = vld [vmem:[%s165 + $0xb0] sm:$0xff]
      %v196 = vld [vmem:[%s165 + $0xb8] sm:$0xff]
      %v197 = vld [vmem:[%s165 + $0xc0] sm:$0xff]
      %v198 = vld [vmem:[%s165 + $0xc8] sm:$0xff]
      %v199 = vld [vmem:[%s165 + $0xd0] sm:$0xff]
      %v200 = vld [vmem:[%s165 + $0xd8] sm:$0xff]
      %v201 = vld [vmem:[%s165 + $0xe0] sm:$0xff]
      %v202 = vld [vmem:[%s165 + $0xe8] sm:$0xff]
      %v203 = vld [vmem:[%s165 + $0xf0] sm:$0xff]
      %v204 = vld [vmem:[%s165 + $0xf8] sm:$0xff]
      %v205 = vld [vmem:[%s165 + $0x100] sm:$0xff]
      %v206 = vld [vmem:[%s165 + $0x108] sm:$0xff]
      %v207 = vld [vmem:[%s165 + $0x110] sm:$0xff]
      %v208 = vld [vmem:[%s165 + $0x118] sm:$0xff]
      %v209 = vld [vmem:[%s165 + $0x120] sm:$0xff]
      %v210 = vld [vmem:[%s165 + $0x128] sm:$0xff]
      %v211 = vld [vmem:[%s165 + $0x130] sm:$0xff]
      %v212 = vld [vmem:[%s165 + $0x138] sm:$0xff]
      %v213 = vld [vmem:[%s165 + $0x140] sm:$0xff]
      %v214 = vld [vmem:[%s165 + $0x148] sm:$0xff]
      %v215 = vld [vmem:[%s165 + $0x150] sm:$0xff]
      %v216 = vld [vmem:[%s165 + $0x158] sm:$0xff]
      %v217 = vld [vmem:[%s165 + $0x160] sm:$0xff]
      %v218 = vld [vmem:[%s165 + $0x168] sm:$0xff]
      %v219 = vld [vmem:[%s165 + $0x170] sm:$0xff]
      %v220 = vld [vmem:[%s165 + $0x178] sm:$0xff]
      %v221 = vld [vmem:[%s165 + $0x180] sm:$0xff]
      %v222 = vld [vmem:[%s165 + $0x188] sm:$0xff]
      %v223 = vld [vmem:[%s165 + $0x190] sm:$0xff]
      %v224 = vld [vmem:[%s165 + $0x198] sm:$0xff]
      %v225 = vld [vmem:[%s165 + $0x1a0] sm:$0xff]
      %v226 = vld [vmem:[%s165 + $0x1a8] sm:$0xff]
      %v227 = vld [vmem:[%s165 + $0x1b0] sm:$0xff]
      %v228 = vld [vmem:[%s165 + $0x1b8] sm:$0xff]
      %v229 = vld [vmem:[%s165 + $0x1c0] sm:$0xff]
      %v230 = vld [vmem:[%s165 + $0x1c8] sm:$0xff]
      %v231 = vld [vmem:[%s165 + $0x1d0] sm:$0xff]
      %v232 = vld [vmem:[%s165 + $0x1d8] sm:$0xff]
      %v233 = vld [vmem:[%s165 + $0x1e0] sm:$0xff]
      %v234 = vld [vmem:[%s165 + $0x1e8] sm:$0xff]
      %v235 = vld [vmem:[%s165 + $0x1f0] sm:$0xff]
      %v236 = vld [vmem:[%s165 + $0x1f8] sm:$0xff]
      %v301 = vunpack.c.l.b16 %v173
      %v302 = vunpack.c.h.b16 %v173
      %v303 = vunpack.c.l.b16 %v174
      %v304 = vunpack.c.h.b16 %v174
      %v305 = vunpack.c.l.b16 %v175
      %v306 = vunpack.c.h.b16 %v175
      %v307 = vunpack.c.l.b16 %v176
      %v308 = vunpack.c.h.b16 %v176
      %v309 = vunpack.c.l.b16 %v177
      %v310 = vunpack.c.h.b16 %v177
      %v311 = vunpack.c.l.b16 %v178
      %v312 = vunpack.c.h.b16 %v178
      %v313 = vunpack.c.l.b16 %v179
      %v314 = vunpack.c.h.b16 %v179
      %v315 = vunpack.c.l.b16 %v180
      %v316 = vunpack.c.h.b16 %v180
      %v317 = vunpack.c.l.b16 %v181
      %v318 = vunpack.c.h.b16 %v181
      %v319 = vunpack.c.l.b16 %v182
      %v320 = vunpack.c.h.b16 %v182
      %v321 = vunpack.c.l.b16 %v183
      %v322 = vunpack.c.h.b16 %v183
      %v323 = vunpack.c.l.b16 %v184
      %v324 = vunpack.c.h.b16 %v184
      %v325 = vunpack.c.l.b16 %v185
      %v326 = vunpack.c.h.b16 %v185
      %v327 = vunpack.c.l.b16 %v186
      %v328 = vunpack.c.h.b16 %v186
      %v329 = vunpack.c.l.b16 %v187
      %v330 = vunpack.c.h.b16 %v187
      %v331 = vunpack.c.l.b16 %v188
      %v332 = vunpack.c.h.b16 %v188
      %v333 = vunpack.c.l.b16 %v189
      %v334 = vunpack.c.h.b16 %v189
      %v335 = vunpack.c.l.b16 %v190
      %v336 = vunpack.c.h.b16 %v190
      %v337 = vunpack.c.l.b16 %v191
      %v338 = vunpack.c.h.b16 %v191
      %v339 = vunpack.c.l.b16 %v192
      %v340 = vunpack.c.h.b16 %v192
      %v341 = vunpack.c.l.b16 %v193
      %v342 = vunpack.c.h.b16 %v193
      %v343 = vunpack.c.l.b16 %v194
      %v344 = vunpack.c.h.b16 %v194
      %v345 = vunpack.c.l.b16 %v195
      %v346 = vunpack.c.h.b16 %v195
      %v347 = vunpack.c.l.b16 %v196
      %v348 = vunpack.c.h.b16 %v196
      %v349 = vunpack.c.l.b16 %v197
      %v350 = vunpack.c.h.b16 %v197
      %v351 = vunpack.c.l.b16 %v198
      %v352 = vunpack.c.h.b16 %v198
      %v353 = vunpack.c.l.b16 %v199
      %v354 = vunpack.c.h.b16 %v199
      %v355 = vunpack.c.l.b16 %v200
      %v356 = vunpack.c.h.b16 %v200
      %v357 = vunpack.c.l.b16 %v201
      %v358 = vunpack.c.h.b16 %v201
      %v359 = vunpack.c.l.b16 %v202
      %v360 = vunpack.c.h.b16 %v202
      %v361 = vunpack.c.l.b16 %v203
      %v362 = vunpack.c.h.b16 %v203
      %v363 = vunpack.c.l.b16 %v204
      %v364 = vunpack.c.h.b16 %v204
      %v365 = vunpack.c.l.b16 %v205
      %v366 = vunpack.c.h.b16 %v205
      %v367 = vunpack.c.l.b16 %v206
      %v368 = vunpack.c.h.b16 %v206
      %v369 = vunpack.c.l.b16 %v207
      %v370 = vunpack.c.h.b16 %v207
      %v371 = vunpack.c.l.b16 %v208
      %v372 = vunpack.c.h.b16 %v208
      %v373 = vunpack.c.l.b16 %v209
      %v374 = vunpack.c.h.b16 %v209
      %v375 = vunpack.c.l.b16 %v210
      %v376 = vunpack.c.h.b16 %v210
      %v377 = vunpack.c.l.b16 %v211
      %v378 = vunpack.c.h.b16 %v211
      %v379 = vunpack.c.l.b16 %v212
      %v380 = vunpack.c.h.b16 %v212
      %v381 = vunpack.c.l.b16 %v213
      %v382 = vunpack.c.h.b16 %v213
      %v383 = vunpack.c.l.b16 %v214
      %v384 = vunpack.c.h.b16 %v214
      %v385 = vunpack.c.l.b16 %v215
      %v386 = vunpack.c.h.b16 %v215
      %v387 = vunpack.c.l.b16 %v216
      %v388 = vunpack.c.h.b16 %v216
      %v389 = vunpack.c.l.b16 %v217
      %v390 = vunpack.c.h.b16 %v217
      %v391 = vunpack.c.l.b16 %v218
      %v392 = vunpack.c.h.b16 %v218
      %v393 = vunpack.c.l.b16 %v219
      %v394 = vunpack.c.h.b16 %v219
      %v395 = vunpack.c.l.b16 %v220
      %v396 = vunpack.c.h.b16 %v220
      %v397 = vunpack.c.l.b16 %v221
      %v398 = vunpack.c.h.b16 %v221
      %v399 = vunpack.c.l.b16 %v222
      %v400 = vunpack.c.h.b16 %v222
      %v401 = vunpack.c.l.b16 %v223
      %v402 = vunpack.c.h.b16 %v223
      %v403 = vunpack.c.l.b16 %v224
      %v404 = vunpack.c.h.b16 %v224
      %v405 = vunpack.c.l.b16 %v225
      %v406 = vunpack.c.h.b16 %v225
      %v407 = vunpack.c.l.b16 %v226
      %v408 = vunpack.c.h.b16 %v226
      %v409 = vunpack.c.l.b16 %v227
      %v410 = vunpack.c.h.b16 %v227
      %v411 = vunpack.c.l.b16 %v228
      %v412 = vunpack.c.h.b16 %v228
      %v413 = vunpack.c.l.b16 %v229
      %v414 = vunpack.c.h.b16 %v229
      %v415 = vunpack.c.l.b16 %v230
      %v416 = vunpack.c.h.b16 %v230
      %v417 = vunpack.c.l.b16 %v231
      %v418 = vunpack.c.h.b16 %v231
      %v419 = vunpack.c.l.b16 %v232
      %v420 = vunpack.c.h.b16 %v232
      %v421 = vunpack.c.l.b16 %v233
      %v422 = vunpack.c.h.b16 %v233
      %v423 = vunpack.c.l.b16 %v234
      %v424 = vunpack.c.h.b16 %v234
      %v425 = vunpack.c.l.b16 %v235
      %v426 = vunpack.c.h.b16 %v235
      %v427 = vunpack.c.l.b16 %v236
      %v428 = vunpack.c.h.b16 %v236
      %v429 = vpack.c.b16 %v309, %v301
      %v430 = vpack.c.b16 %v310, %v302
      %v431 = vpack.c.b16 %v311, %v303
      %v432 = vpack.c.b16 %v312, %v304
      %v433 = vpack.c.b16 %v313, %v305
      %v434 = vpack.c.b16 %v314, %v306
      %v435 = vpack.c.b16 %v315, %v307
      %v436 = vpack.c.b16 %v316, %v308
      %v437 = vpack.c.b16 %v325, %v317
      %v438 = vpack.c.b16 %v326, %v318
      %v439 = vpack.c.b16 %v327, %v319
      %v440 = vpack.c.b16 %v328, %v320
      %v441 = vpack.c.b16 %v329, %v321
      %v442 = vpack.c.b16 %v330, %v322
      %v443 = vpack.c.b16 %v331, %v323
      %v444 = vpack.c.b16 %v332, %v324
      %v445 = vpack.c.b16 %v341, %v333
      %v446 = vpack.c.b16 %v342, %v334
      %v447 = vpack.c.b16 %v343, %v335
      %v448 = vpack.c.b16 %v344, %v336
      %v449 = vpack.c.b16 %v345, %v337
      %v450 = vpack.c.b16 %v346, %v338
      %v451 = vpack.c.b16 %v347, %v339
      %v452 = vpack.c.b16 %v348, %v340
      %v453 = vpack.c.b16 %v357, %v349
      %v454 = vpack.c.b16 %v358, %v350
      %v455 = vpack.c.b16 %v359, %v351
      %v456 = vpack.c.b16 %v360, %v352
      %v457 = vpack.c.b16 %v361, %v353
      %v458 = vpack.c.b16 %v362, %v354
      %v459 = vpack.c.b16 %v363, %v355
      %v460 = vpack.c.b16 %v364, %v356
      %v461 = vpack.c.b16 %v373, %v365
      %v462 = vpack.c.b16 %v374, %v366
      %v463 = vpack.c.b16 %v375, %v367
      %v464 = vpack.c.b16 %v376, %v368
      %v465 = vpack.c.b16 %v377, %v369
      %v466 = vpack.c.b16 %v378, %v370
      %v467 = vpack.c.b16 %v379, %v371
      %v468 = vpack.c.b16 %v380, %v372
      %v469 = vpack.c.b16 %v389, %v381
      %v470 = vpack.c.b16 %v390, %v382
      %v471 = vpack.c.b16 %v391, %v383
      %v472 = vpack.c.b16 %v392, %v384
      %v473 = vpack.c.b16 %v393, %v385
      %v474 = vpack.c.b16 %v394, %v386
      %v475 = vpack.c.b16 %v395, %v387
      %v476 = vpack.c.b16 %v396, %v388
      %v477 = vpack.c.b16 %v405, %v397
      %v478 = vpack.c.b16 %v406, %v398
      %v479 = vpack.c.b16 %v407, %v399
      %v480 = vpack.c.b16 %v408, %v400
      %v481 = vpack.c.b16 %v409, %v401
      %v482 = vpack.c.b16 %v410, %v402
      %v483 = vpack.c.b16 %v411, %v403
      %v484 = vpack.c.b16 %v412, %v404
      %v485 = vpack.c.b16 %v421, %v413
      %v486 = vpack.c.b16 %v422, %v414
      %v487 = vpack.c.b16 %v423, %v415
      %v488 = vpack.c.b16 %v424, %v416
      %v489 = vpack.c.b16 %v425, %v417
      %v490 = vpack.c.b16 %v426, %v418
      %v491 = vpack.c.b16 %v427, %v419
      %v492 = vpack.c.b16 %v428, %v420
      %557 = vmatprep.subr.bf16.mxu0 %v486
      %558 = vmatpush1.bf16.msra.mxu0 %v485
      %559 = vmatprep.subr.bf16.mxu0 %v478
      %560 = vmatpush1.bf16.msra.mxu0 %v477
      %561 = vmatprep.subr.bf16.mxu0 %v470
      %562 = vmatpush1.bf16.msra.mxu0 %v469
      %563 = vmatprep.subr.bf16.mxu0 %v462
      %564 = vmatpush1.bf16.msra.mxu0 %v461
      %565 = vmatprep.subr.bf16.mxu0 %v454
      %566 = vmatpush1.bf16.msra.mxu0 %v453
      %567 = vmatprep.subr.bf16.mxu0 %v446
      %568 = vmatpush1.bf16.msra.mxu0 %v445
      %569 = vmatprep.subr.bf16.mxu0 %v438
      %570 = vmatpush1.bf16.msra.mxu0 %v437
      %571 = vmatprep.subr.bf16.mxu0 %v430
      %572 = vmatpush1.bf16.msra.mxu0 %v429
      %573 = vmatprep.subr.bf16.mxu0 0
      %574 = vmatpush2.bf16.msra.mxu0 0
      %575 = vmatprep.subr.bf16.mxu0 0
      %576 = vmatpush2.bf16.msra.mxu0 0
      %577 = vmatprep.subr.bf16.mxu0 0
      %578 = vmatpush2.bf16.msra.mxu0 0
      %579 = vmatprep.subr.bf16.mxu0 0
      %580 = vmatpush2.bf16.msra.mxu0 0
      %581 = vmatprep.subr.bf16.mxu0 0
      %582 = vmatpush2.bf16.msra.mxu0 0
      %583 = vmatprep.subr.bf16.mxu0 0
      %584 = vmatpush2.bf16.msra.mxu0 0
      %585 = vmatprep.subr.bf16.mxu0 0
      %586 = vmatpush2.bf16.msra.mxu0 0
      %587 = vmatprep.subr.bf16.mxu0 0
      %588 = vmatpush2.bf16.msra.mxu0 0
      %589 = vmatprep.mubr.bf16.mxu0 0
      %590 = vmatmul.mubr.bf16.gmra.mxu0 %v172
      %v591 = vpop.f32.mrf.mxu0
      %v592 = vadd.f32 0.0, %v591
      %v593 = vpop.f32.mrf.mxu0
      %v594 = vadd.f32 0.0, %v593
      %v595 = vpop.f32.mrf.mxu0
      %v596 = vpop.f32.mrf.mxu0
      %597 = vdwg.mxu0
      %598 = vmatprep.subr.bf16.mxu0 %v488
      %599 = vmatpush1.bf16.msra.mxu0 %v487
      %600 = vmatprep.subr.bf16.mxu0 %v480
      %601 = vmatpush1.bf16.msra.mxu0 %v479
      %602 = vmatprep.subr.bf16.mxu0 %v472
      %603 = vmatpush1.bf16.msra.mxu0 %v471
      %604 = vmatprep.subr.bf16.mxu0 %v464
      %605 = vmatpush1.bf16.msra.mxu0 %v463
      %606 = vmatprep.subr.bf16.mxu0 %v456
      %607 = vmatpush1.bf16.msra.mxu0 %v455
      %608 = vmatprep.subr.bf16.mxu0 %v448
      %609 = vmatpush1.bf16.msra.mxu0 %v447
      %610 = vmatprep.subr.bf16.mxu0 %v440
      %611 = vmatpush1.bf16.msra.mxu0 %v439
      %612 = vmatprep.subr.bf16.mxu0 %v432
      %613 = vmatpush1.bf16.msra.mxu0 %v431
      %614 = vmatprep.subr.bf16.mxu0 0
      %615 = vmatpush2.bf16.msra.mxu0 0
      %616 = vmatprep.subr.bf16.mxu0 0
      %617 = vmatpush2.bf16.msra.mxu0 0
      %618 = vmatprep.subr.bf16.mxu0 0
      %619 = vmatpush2.bf16.msra.mxu0 0
      %620 = vmatprep.subr.bf16.mxu0 0
      %621 = vmatpush2.bf16.msra.mxu0 0
      %622 = vmatprep.subr.bf16.mxu0 0
      %623 = vmatpush2.bf16.msra.mxu0 0
      %624 = vmatprep.subr.bf16.mxu0 0
      %625 = vmatpush2.bf16.msra.mxu0 0
      %626 = vmatprep.subr.bf16.mxu0 0
      %627 = vmatpush2.bf16.msra.mxu0 0
      %628 = vmatprep.subr.bf16.mxu0 0
      %629 = vmatpush2.bf16.msra.mxu0 0
      %630 = vmatprep.mubr.bf16.mxu0 0
      %631 = vmatmul.mubr.bf16.gmra.mxu0 %v172
      %v632 = vpop.f32.mrf.mxu0
      %v633 = vadd.f32 0.0, %v632
      %v634 = vpop.f32.mrf.mxu0
      %v635 = vadd.f32 0.0, %v634
      %v636 = vpop.f32.mrf.mxu0
      %v637 = vpop.f32.mrf.mxu0
      %638 = vdwg.mxu0
      %639 = vmatprep.subr.bf16.mxu0 %v490
      %640 = vmatpush1.bf16.msra.mxu0 %v489
      %641 = vmatprep.subr.bf16.mxu0 %v482
      %642 = vmatpush1.bf16.msra.mxu0 %v481
      %643 = vmatprep.subr.bf16.mxu0 %v474
      %644 = vmatpush1.bf16.msra.mxu0 %v473
      %645 = vmatprep.subr.bf16.mxu0 %v466
      %646 = vmatpush1.bf16.msra.mxu0 %v465
      %647 = vmatprep.subr.bf16.mxu0 %v458
      %648 = vmatpush1.bf16.msra.mxu0 %v457
      %649 = vmatprep.subr.bf16.mxu0 %v450
      %650 = vmatpush1.bf16.msra.mxu0 %v449
      %651 = vmatprep.subr.bf16.mxu0 %v442
      %652 = vmatpush1.bf16.msra.mxu0 %v441
      %653 = vmatprep.subr.bf16.mxu0 %v434
      %654 = vmatpush1.bf16.msra.mxu0 %v433
      %655 = vmatprep.subr.bf16.mxu0 0
      %656 = vmatpush2.bf16.msra.mxu0 0
      %657 = vmatprep.subr.bf16.mxu0 0
      %658 = vmatpush2.bf16.msra.mxu0 0
      %659 = vmatprep.subr.bf16.mxu0 0
      %660 = vmatpush2.bf16.msra.mxu0 0
      %661 = vmatprep.subr.bf16.mxu0 0
      %662 = vmatpush2.bf16.msra.mxu0 0
      %663 = vmatprep.subr.bf16.mxu0 0
      %664 = vmatpush2.bf16.msra.mxu0 0
      %665 = vmatprep.subr.bf16.mxu0 0
      %666 = vmatpush2.bf16.msra.mxu0 0
      %667 = vmatprep.subr.bf16.mxu0 0
      %668 = vmatpush2.bf16.msra.mxu0 0
      %669 = vmatprep.subr.bf16.mxu0 0
      %670 = vmatpush2.bf16.msra.mxu0 0
      %671 = vmatprep.mubr.bf16.mxu0 0
      %672 = vmatmul.mubr.bf16.gmra.mxu0 %v172
      %v673 = vpop.f32.mrf.mxu0
      %v674 = vadd.f32 0.0, %v673
      %v675 = vpop.f32.mrf.mxu0
      %v676 = vadd.f32 0.0, %v675
      %v677 = vpop.f32.mrf.mxu0
      %v678 = vpop.f32.mrf.mxu0
      %679 = vdwg.mxu0
      %680 = vmatprep.subr.bf16.mxu0 %v492
      %681 = vmatpush1.bf16.msra.mxu0 %v491
      %682 = vmatprep.subr.bf16.mxu0 %v484
      %683 = vmatpush1.bf16.msra.mxu0 %v483
      %684 = vmatprep.subr.bf16.mxu0 %v476
      %685 = vmatpush1.bf16.msra.mxu0 %v475
      %686 = vmatprep.subr.bf16.mxu0 %v468
      %687 = vmatpush1.bf16.msra.mxu0 %v467
      %688 = vmatprep.subr.bf16.mxu0 %v460
      %689 = vmatpush1.bf16.msra.mxu0 %v459
      %690 = vmatprep.subr.bf16.mxu0 %v452
      %691 = vmatpush1.bf16.msra.mxu0 %v451
      %692 = vmatprep.subr.bf16.mxu0 %v444
      %693 = vmatpush1.bf16.msra.mxu0 %v443
      %694 = vmatprep.subr.bf16.mxu0 %v436
      %695 = vmatpush1.bf16.msra.mxu0 %v435
      %696 = vmatprep.subr.bf16.mxu0 0
      %697 = vmatpush2.bf16.msra.mxu0 0
      %698 = vmatprep.subr.bf16.mxu0 0
      %699 = vmatpush2.bf16.msra.mxu0 0
      %700 = vmatprep.subr.bf16.mxu0 0
      %701 = vmatpush2.bf16.msra.mxu0 0
      %702 = vmatprep.subr.bf16.mxu0 0
      %703 = vmatpush2.bf16.msra.mxu0 0
      %704 = vmatprep.subr.bf16.mxu0 0
      %705 = vmatpush2.bf16.msra.mxu0 0
      %706 = vmatprep.subr.bf16.mxu0 0
      %707 = vmatpush2.bf16.msra.mxu0 0
      %708 = vmatprep.subr.bf16.mxu0 0
      %709 = vmatpush2.bf16.msra.mxu0 0
      %710 = vmatprep.subr.bf16.mxu0 0
      %711 = vmatpush2.bf16.msra.mxu0 0
      %712 = vmatprep.mubr.bf16.mxu0 0
      %713 = vmatmul.mubr.bf16.gmra.mxu0 %v172
      %v714 = vpop.f32.mrf.mxu0
      %v715 = vadd.f32 0.0, %v714
      %v716 = vpop.f32.mrf.mxu0
      %v717 = vadd.f32 0.0, %v716
      %v718 = vpop.f32.mrf.mxu0
      %v719 = vpop.f32.mrf.mxu0
      %720 = vdwg.mxu0
      %v721 = vmax.f32 %v592, %v633
      %v722 = vmax.f32 %v594, %v635
      %v723 = vmax.f32 %v674, %v715
      %v724 = vmax.f32 %v676, %v717
      %v725 = vmax.f32 %v721, %v723
      %v726 = vmax.f32 %v722, %v724
      %v727 = vld [vmem:[%s2] sm:$0x3f]
      %729 = vset.pattern.permute.xlu0 0
      %730 = vperm.xlu0 %729, %v727
      %v731 = vpop.permute.xlu0 %730
      %v733 = vadd.f32 %v725, %v731
      %v734 = vadd.f32 %v726, %v731
      %v735 = vmax.f32 %v733, 0.0
      %v736 = vmax.f32 %v734, 0.0
      %737 = vst [vmem:[%s170] sm:$0x3f] %v735
      %738 = vst [vmem:[%s170 + $0x8] sm:$0x3f] %v736
      %p739 = scmp.lt.s32.totalorder %s14, 1
      %s740 = scalar_select %p739, %s14, 1
      %s741 = smul.addr %s740, 2
      %s742 = smul.addr %s741, 8
      %s743 = scalar_lea.vmem %s3, %s742
      // Predicated region
      $region33: #{neuralnet_forward.2} parent=31 // pred_check
        %p744 = pneg %p100
      $region34: #{neuralnet_forward.2} parent=31 // pred_check_branch
        %746 = sbr.rel (%p744) target = $region36
      $region35: #{neuralnet_forward.2} parent=31 // pred_region
        _
      $region36: #{neuralnet_forward.2} parent=31 // pred_fallthru
        _
    $region32: #{neuralnet_forward.2} parent=5 // pred_fallthru
      _
    %p747 = scmp.le.s32.totalorder 2, %s9
    // Predicated region
    $region37: #{neuralnet_forward.2} parent=5 // pred_check
      %p748 = pneg %p747
    $region38: #{neuralnet_forward.2} parent=5 // pred_check_branch
      %750 = sbr.rel (%p748) target = $region40
    $region39: #{neuralnet_forward.2} parent=5 // pred_region
      %s751 = ssub.s32 %s9, 2
      // Predicated region
      $region41: #{neuralnet_forward.2} parent=39 // pred_check
        %p752 = pneg %p106
      $region42: #{neuralnet_forward.2} parent=39 // pred_check_branch
        %754 = sbr.rel (%p752) target = $region44
      $region43: #{neuralnet_forward.2} parent=39 // pred_region
        %p755 = scmp.lt.s32.totalorder %s15, 1
        %s756 = scalar_select %p755, %s15, 1
        %s757 = smul.addr %s756, 2
        %s758 = smul.addr %s757, 8
        %s759 = scalar_lea.vmem %s3, %s758
      $region44: #{neuralnet_forward.2} parent=39 // pred_fallthru
        _
    $region40: #{neuralnet_forward.2} parent=5 // pred_fallthru
      _
  $region6: #{neuralnet_forward.2} parent=0 // loop_footer
    %s13 = sadd.s32 1, %s9
  $region7: #{neuralnet_forward.2} parent=0 // loop_footer_branch
    %8 = sbr.rel target = $region3
  $region8: #{neuralnet_forward.2} parent=0 // loop_exit
    _

// kernel: neuralnet_forward.3
$region0: #{neuralnet_forward.3}
  #allocation0 [shape = 'u32[]', space=smem, size = 0x4, offset = 0x4, fixed_abs, tag = 'smem constant byte address 0x4 - core index']
  #allocation1 [shape = 'u32[144,128]{1,0:T(1,128)}', space=vmem, size = 0x12000, scoped, tag = 'internal scratch']
  %s0 = inlined_call_operand.vmem [shape: bf16[2,256,512], index: 0, kind: input, shape index: {}]
  %s1 = inlined_call_operand.vmem [shape: bf16[9,256], index: 1, kind: input, shape index: {}]
  %s2 = inlined_call_operand.vmem [shape: f32[9,1], index: 2, kind: input, shape index: {}]
  %s3 = inlined_call_operand.vmem [shape: bf16[9,128,128], index: 3, kind: input, shape index: {}]
  %s4 = inlined_call_operand.vmem [shape: f32[1,128], index: 4, kind: input, shape index: {}]
  %s5 = inlined_call_operand.vmem [shape: bf16[128,128], index: 5, kind: input, shape index: {}]
  %s6 = inlined_call_operand.vmem [shape: f32[1,128], index: 6, kind: input, shape index: {}]
  %s7 = inlined_call_operand.vmem [shape: f32[2,8,128], index: 7, kind: output, shape index: {}]
  %s8 = sld [smem:[#allocation0]]
  $region61: #{neuralnet_forward.3} parent=0
    _
  %s10 = ssub.s32 1, %s8
  %s11 = scalar_select 0, %s10, %s8
  loop: start=0, step=1, limit=4
  $region2: #{neuralnet_forward.3} parent=0 // loop_pre_header
    _
  $region3: #{neuralnet_forward.3} parent=0 // loop_header
    %s13 = sphi 0, %s17
    %p14 = scmp.ge.s32.totalorder %s13, 4
    %s23 = sphi 0, %s25
    %s26 = sphi 0, %s23
    %s27 = sphi 0, %s26
    %s43 = sphi 0, %s27
    %s47 = sphi 0, %s47
    %s49 = sphi 0, %s47
    %s50 = sphi 0, %s49
    %s64 = sphi 0, %s50
    %s68 = sphi 0, %s68
    %s70 = sphi 0, %s68
    %s71 = sphi 0, %s70
    %s85 = sphi 0, %s71
    %s89 = sphi 0, %s89
    %s91 = sphi 0, %s89
    %s92 = sphi 0, %s91
    %s106 = sphi 0, %s92
    %s110 = sphi 0, %s110
    %s112 = sphi 0, %s110
    %s113 = sphi 0, %s112
    %s127 = sphi 0, %s113
    %s131 = sphi 0, %s131
    %s133 = sphi 0, %s131
    %s134 = sphi 0, %s133
    %s148 = sphi 0, %s134
    %s152 = sphi 0, %s152
    %s154 = sphi 0, %s152
    %s155 = sphi 0, %s154
    %s169 = sphi 0, %s155
    %s175 = sphi 0, %s177
    %s178 = sphi 0, %s175
    %s179 = sphi 0, %s178
    %s195 = sphi 0, %s179
  $region4: #{neuralnet_forward.3} parent=0 // loop_header_branch
    %16 = sbr.rel (%p14) target = $region8
  $region5: #{neuralnet_forward.3} parent=0 // loop_body
    %s18 = ssub.s32 %s13, 1
    %s19 = ssub.s32 %s13, 2
    %s20 = sadd.s32 %s13, 1
    %s21 = ssub.s32 %s13, %s20
    %p22 = scmp.eq.s32.totalorder %s21, 0
    %s24 = sadd.s32 %s23, 1
    %s25 = scalar_select %p22, %s23, %s24
    %p28 = pneg %p22
    %p29 = scmp.eq.s32.totalorder %s13, 1
    %p30 = por %p28, %p29
    %p31 = scmp.ne.s32.totalorder %s23, %s26
    %p32 = scmp.eq.s32.totalorder %s13, 0
    %p33 = por %p31, %p32
    %p34 = scmp.ne.s32.totalorder %s23, %s26
    %p35 = scmp.eq.s32.totalorder %s18, 1
    %p36 = por %p34, %p35
    %p37 = scmp.ne.s32.totalorder %s26, %s27
    %p38 = scmp.eq.s32.totalorder %s18, 0
    %p39 = por %p37, %p38
    %p40 = scmp.ne.s32.totalorder %s26, %s27
    %p41 = scmp.eq.s32.totalorder %s19, 1
    %p42 = por %p40, %p41
    %p44 = scmp.ne.s32.totalorder %s27, %s43
    %p45 = scmp.eq.s32.totalorder %s19, 0
    %p46 = por %p44, %p45
    %s48 = sadd.s32 %s47, 1
    %p51 = scmp.eq.s32.totalorder %s13, 1
    %p52 = scmp.ne.s32.totalorder %s47, %s49
    %p53 = scmp.eq.s32.totalorder %s13, 0
    %p54 = por %p52, %p53
    %p55 = scmp.ne.s32.totalorder %s47, %s49
    %p56 = scmp.eq.s32.totalorder %s18, 1
    %p57 = por %p55, %p56
    %p58 = scmp.ne.s32.totalorder %s49, %s50
    %p59 = scmp.eq.s32.totalorder %s18, 0
    %p60 = por %p58, %p59
    %p61 = scmp.ne.s32.totalorder %s49, %s50
    %p62 = scmp.eq.s32.totalorder %s19, 1
    %p63 = por %p61, %p62
    %p65 = scmp.ne.s32.totalorder %s50, %s64
    %p66 = scmp.eq.s32.totalorder %s19, 0
    %p67 = por %p65, %p66
    %s69 = sadd.s32 %s68, 1
    %p72 = scmp.eq.s32.totalorder %s13, 1
    %p73 = scmp.ne.s32.totalorder %s68, %s70
    %p74 = scmp.eq.s32.totalorder %s13, 0
    %p75 = por %p73, %p74
    %p76 = scmp.ne.s32.totalorder %s68, %s70
    %p77 = scmp.eq.s32.totalorder %s18, 1
    %p78 = por %p76, %p77
    %p79 = scmp.ne.s32.totalorder %s70, %s71
    %p80 = scmp.eq.s32.totalorder %s18, 0
    %p81 = por %p79, %p80
    %p82 = scmp.ne.s32.totalorder %s70, %s71
    %p83 = scmp.eq.s32.totalorder %s19, 1
    %p84 = por %p82, %p83
    %p86 = scmp.ne.s32.totalorder %s71, %s85
    %p87 = scmp.eq.s32.totalorder %s19, 0
    %p88 = por %p86, %p87
    %s90 = sadd.s32 %s89, 1
    %p93 = scmp.eq.s32.totalorder %s13, 1
    %p94 = scmp.ne.s32.totalorder %s89, %s91
    %p95 = scmp.eq.s32.totalorder %s13, 0
    %p96 = por %p94, %p95
    %p97 = scmp.ne.s32.totalorder %s89, %s91
    %p98 = scmp.eq.s32.totalorder %s18, 1
    %p99 = por %p97, %p98
    %p100 = scmp.ne.s32.totalorder %s91, %s92
    %p101 = scmp.eq.s32.totalorder %s18, 0
    %p102 = por %p100, %p101
    %p103 = scmp.ne.s32.totalorder %s91, %s92
    %p104 = scmp.eq.s32.totalorder %s19, 1
    %p105 = por %p103, %p104
    %p107 = scmp.ne.s32.totalorder %s92, %s106
    %p108 = scmp.eq.s32.totalorder %s19, 0
    %p109 = por %p107, %p108
    %s111 = sadd.s32 %s110, 1
    %p114 = scmp.eq.s32.totalorder %s13, 1
    %p115 = scmp.ne.s32.totalorder %s110, %s112
    %p116 = scmp.eq.s32.totalorder %s13, 0
    %p117 = por %p115, %p116
    %p118 = scmp.ne.s32.totalorder %s110, %s112
    %p119 = scmp.eq.s32.totalorder %s18, 1
    %p120 = por %p118, %p119
    %p121 = scmp.ne.s32.totalorder %s112, %s113
    %p122 = scmp.eq.s32.totalorder %s18, 0
    %p123 = por %p121, %p122
    %p124 = scmp.ne.s32.totalorder %s112, %s113
    %p125 = scmp.eq.s32.totalorder %s19, 1
    %p126 = por %p124, %p125
    %p128 = scmp.ne.s32.totalorder %s113, %s127
    %p129 = scmp.eq.s32.totalorder %s19, 0
    %p130 = por %p128, %p129
    %s132 = sadd.s32 %s131, 1
    %p135 = scmp.eq.s32.totalorder %s13, 1
    %p136 = scmp.ne.s32.totalorder %s131, %s133
    %p137 = scmp.eq.s32.totalorder %s13, 0
    %p138 = por %p136, %p137
    %p139 = scmp.ne.s32.totalorder %s131, %s133
    %p140 = scmp.eq.s32.totalorder %s18, 1
    %p141 = por %p139, %p140
    %p142 = scmp.ne.s32.totalorder %s133, %s134
    %p143 = scmp.eq.s32.totalorder %s18, 0
    %p144 = por %p142, %p143
    %p145 = scmp.ne.s32.totalorder %s133, %s134
    %p146 = scmp.eq.s32.totalorder %s19, 1
    %p147 = por %p145, %p146
    %p149 = scmp.ne.s32.totalorder %s134, %s148
    %p150 = scmp.eq.s32.totalorder %s19, 0
    %p151 = por %p149, %p150
    %s153 = sadd.s32 %s152, 1
    %p156 = scmp.eq.s32.totalorder %s13, 1
    %p157 = scmp.ne.s32.totalorder %s152, %s154
    %p158 = scmp.eq.s32.totalorder %s13, 0
    %p159 = por %p157, %p158
    %p160 = scmp.ne.s32.totalorder %s152, %s154
    %p161 = scmp.eq.s32.totalorder %s18, 1
    %p162 = por %p160, %p161
    %p163 = scmp.ne.s32.totalorder %s154, %s155
    %p164 = scmp.eq.s32.totalorder %s18, 0
    %p165 = por %p163, %p164
    %p166 = scmp.ne.s32.totalorder %s154, %s155
    %p167 = scmp.eq.s32.totalorder %s19, 1
    %p168 = por %p166, %p167
    %p170 = scmp.ne.s32.totalorder %s155, %s169
    %p171 = scmp.eq.s32.totalorder %s19, 0
    %p172 = por %p170, %p171
    %s173 = ssub.s32 %s13, %s20
    %p174 = scmp.eq.s32.totalorder %s173, 0
    %s176 = sadd.s32 %s175, 1
    %s177 = scalar_select %p174, %s175, %s176
    %p180 = pneg %p174
    %p181 = scmp.eq.s32.totalorder %s13, 1
    %p182 = por %p180, %p181
    %p183 = scmp.ne.s32.totalorder %s175, %s178
    %p184 = scmp.eq.s32.totalorder %s13, 0
    %p185 = por %p183, %p184
    %p186 = scmp.ne.s32.totalorder %s175, %s178
    %p187 = scmp.eq.s32.totalorder %s18, 1
    %p188 = por %p186, %p187
    %p189 = scmp.ne.s32.totalorder %s178, %s179
    %p190 = scmp.eq.s32.totalorder %s18, 0
    %p191 = por %p189, %p190
    %p192 = scmp.ne.s32.totalorder %s178, %s179
    %p193 = scmp.eq.s32.totalorder %s19, 1
    %p194 = por %p192, %p193
    %p196 = scmp.ne.s32.totalorder %s179, %s195
    %p197 = scmp.eq.s32.totalorder %s19, 0
    %p198 = por %p196, %p197
    %p199 = scmp.le.s32.totalorder 1, %s13
    %p200 = scmp.lt.s32.totalorder %s13, 3
    %p201 = pnand %p199, %p200
    %p202 = pneg %p201
    // Predicated region
    $region9: #{neuralnet_forward.3} parent=5 // pred_check
      _
    $region10: #{neuralnet_forward.3} parent=5 // pred_check_branch
      %204 = sbr.rel (%p201) target = $region12
    $region11: #{neuralnet_forward.3} parent=5 // pred_region
      %s205 = ssub.s32 %s13, 1
      // Predicated region
      $region13: #{neuralnet_forward.3} parent=11 // pred_check
        %p206 = pneg %p60
      $region14: #{neuralnet_forward.3} parent=11 // pred_check_branch
        %208 = sbr.rel (%p206) target = $region16
      $region15: #{neuralnet_forward.3} parent=11 // pred_region
        _
      $region16: #{neuralnet_forward.3} parent=11 // pred_fallthru
        _
      // Predicated region
      $region17: #{neuralnet_forward.3} parent=11 // pred_check
        %p209 = pneg %p81
      $region18: #{neuralnet_forward.3} parent=11 // pred_check_branch
        %211 = sbr.rel (%p209) target = $region20
      $region19: #{neuralnet_forward.3} parent=11 // pred_region
        _
      $region20: #{neuralnet_forward.3} parent=11 // pred_fallthru
        _
      // Predicated region
      $region21: #{neuralnet_forward.3} parent=11 // pred_check
        %p212 = pneg %p102
      $region22: #{neuralnet_forward.3} parent=11 // pred_check_branch
        %214 = sbr.rel (%p212) target = $region24
      $region23: #{neuralnet_forward.3} parent=11 // pred_region
        _
      $region24: #{neuralnet_forward.3} parent=11 // pred_fallthru
        _
      // Predicated region
      $region25: #{neuralnet_forward.3} parent=11 // pred_check
        %p215 = pneg %p123
      $region26: #{neuralnet_forward.3} parent=11 // pred_check_branch
        %217 = sbr.rel (%p215) target = $region28
      $region27: #{neuralnet_forward.3} parent=11 // pred_region
        _
      $region28: #{neuralnet_forward.3} parent=11 // pred_fallthru
        _
      // Predicated region
      $region29: #{neuralnet_forward.3} parent=11 // pred_check
        %p218 = pneg %p144
      $region30: #{neuralnet_forward.3} parent=11 // pred_check_branch
        %220 = sbr.rel (%p218) target = $region32
      $region31: #{neuralnet_forward.3} parent=11 // pred_region
        _
      $region32: #{neuralnet_forward.3} parent=11 // pred_fallthru
        _
      // Predicated region
      $region33: #{neuralnet_forward.3} parent=11 // pred_check
        %p221 = pneg %p165
      $region34: #{neuralnet_forward.3} parent=11 // pred_check_branch
        %223 = sbr.rel (%p221) target = $region36
      $region35: #{neuralnet_forward.3} parent=11 // pred_region
        _
      $region36: #{neuralnet_forward.3} parent=11 // pred_fallthru
        _
    $region12: #{neuralnet_forward.3} parent=5 // pred_fallthru
      _
    %p224 = scmp.lt.s32.totalorder %s13, 2
    // Predicated region
    $region37: #{neuralnet_forward.3} parent=5 // pred_check
      %p225 = pneg %p224
    $region38: #{neuralnet_forward.3} parent=5 // pred_check_branch
      %227 = sbr.rel (%p225) target = $region40
    $region39: #{neuralnet_forward.3} parent=5 // pred_region
      // Predicated region
      $region41: #{neuralnet_forward.3} parent=39 // pred_check
        %p228 = pneg %p33
      $region42: #{neuralnet_forward.3} parent=39 // pred_check_branch
        %230 = sbr.rel (%p228) target = $region44
      $region43: #{neuralnet_forward.3} parent=39 // pred_region
        %p231 = scmp.lt.s32.totalorder %s13, 1
        %s232 = scalar_select %p231, %s13, 1
        %s233 = smul.addr %s232, 128
        %s234 = smul.addr %s233, 4
        %s235 = scalar_lea.vmem %s0, %s234
      $region44: #{neuralnet_forward.3} parent=39 // pred_fallthru
        _
    $region40: #{neuralnet_forward.3} parent=5 // pred_fallthru
      _
    %p236 = scmp.le.s32.totalorder 1, %s13
    %p237 = scmp.lt.s32.totalorder %s13, 3
    %p238 = pnand %p236, %p237
    %p239 = pneg %p238
    // Predicated region
    $region45: #{neuralnet_forward.3} parent=5 // pred_check
      _
    $region46: #{neuralnet_forward.3} parent=5 // pred_check_branch
      %241 = sbr.rel (%p238) target = $region48
    $region47: #{neuralnet_forward.3} parent=5 // pred_region
      %s242 = ssub.s32 %s13, 1
      %p243 = scmp.lt.s32.totalorder %s18, 1
      %s244 = scalar_select %p243, %s18, 1
      %s245 = smul.addr %s244, 128
      %s246 = smul.addr %s245, 4
      %s247 = scalar_lea.vmem %s0, %s246
      %p248 = pneg %p39
      %p249 = pneg %p36
      %p250 = pneg %p60
      %p251 = pneg %p57
      %p252 = pneg %p81
      %p253 = pneg %p78
      %p254 = pneg %p102
      %p255 = pneg %p99
      %p256 = pneg %p123
      %p257 = pneg %p120
      %p258 = pneg %p144
      %p259 = pneg %p141
      %p260 = pneg %p165
      %p261 = pneg %p162
      %p262 = pneg %p191
      %p263 = pneg %p188
      %p264 = scmp.lt.s32.totalorder %s18, 1
      %s265 = scalar_select %p264, %s18, 1
      %s266 = smul.addr %s265, 8
      %s267 = scalar_lea.vmem %s7, %s266
      %p268 = scmp.lt.s32.totalorder %s18, 1
      %s269 = scalar_select %p268, %s18, 1
      %s270 = smul.addr %s269, 128
      %s271 = smul.addr %s270, 4
      %s272 = scalar_lea.vmem %s0, %s271
      %p273 = scmp.lt.s32.totalorder %s18, 1
      %s274 = scalar_select %p273, %s18, 1
      %s275 = smul.addr %s274, 8
      %s276 = scalar_lea.vmem %s7, %s275
      %v278 = vld [vmem:[%s1] sm:$0xff]
      %v279 = vld [vmem:[%s1 + $0x8] sm:$0x11]
      %v280 = vld [vmem:[%s272] sm:$0xff]
      %v281 = vld [vmem:[%s272 + $0x8] sm:$0xff]
      %v282 = vld [vmem:[%s272 + $0x10] sm:$0xff]
      %v283 = vld [vmem:[%s272 + $0x18] sm:$0xff]
      %v284 = vld [vmem:[%s272 + $0x20] sm:$0xff]
      %v285 = vld [vmem:[%s272 + $0x28] sm:$0xff]
      %v286 = vld [vmem:[%s272 + $0x30] sm:$0xff]
      %v287 = vld [vmem:[%s272 + $0x38] sm:$0xff]
      %v288 = vld [vmem:[%s272 + $0x40] sm:$0xff]
      %v289 = vld [vmem:[%s272 + $0x48] sm:$0xff]
      %v290 = vld [vmem:[%s272 + $0x50] sm:$0xff]
      %v291 = vld [vmem:[%s272 + $0x58] sm:$0xff]
      %v292 = vld [vmem:[%s272 + $0x60] sm:$0xff]
      %v293 = vld [vmem:[%s272 + $0x68] sm:$0xff]
      %v294 = vld [vmem:[%s272 + $0x70] sm:$0xff]
      %v295 = vld [vmem:[%s272 + $0x78] sm:$0xff]
      %v296 = vld [vmem:[%s272 + $0x80] sm:$0xff]
      %v297 = vld [vmem:[%s272 + $0x88] sm:$0xff]
      %v298 = vld [vmem:[%s272 + $0x90] sm:$0xff]
      %v299 = vld [vmem:[%s272 + $0x98] sm:$0xff]
      %v300 = vld [vmem:[%s272 + $0xa0] sm:$0xff]
      %v301 = vld [vmem:[%s272 + $0xa8] sm:$0xff]
      %v302 = vld [vmem:[%s272 + $0xb0] sm:$0xff]
      %v303 = vld [vmem:[%s272 + $0xb8] sm:$0xff]
      %v304 = vld [vmem:[%s272 + $0xc0] sm:$0xff]
      %v305 = vld [vmem:[%s272 + $0xc8] sm:$0xff]
      %v306 = vld [vmem:[%s272 + $0xd0] sm:$0xff]
      %v307 = vld [vmem:[%s272 + $0xd8] sm:$0xff]
      %v308 = vld [vmem:[%s272 + $0xe0] sm:$0xff]
      %v309 = vld [vmem:[%s272 + $0xe8] sm:$0xff]
      %v310 = vld [vmem:[%s272 + $0xf0] sm:$0xff]
      %v311 = vld [vmem:[%s272 + $0xf8] sm:$0xff]
      %v312 = vld [vmem:[%s272 + $0x100] sm:$0xff]
      %v313 = vld [vmem:[%s272 + $0x108] sm:$0xff]
      %v314 = vld [vmem:[%s272 + $0x110] sm:$0xff]
      %v315 = vld [vmem:[%s272 + $0x118] sm:$0xff]
      %v316 = vld [vmem:[%s272 + $0x120] sm:$0xff]
      %v317 = vld [vmem:[%s272 + $0x128] sm:$0xff]
      %v318 = vld [vmem:[%s272 + $0x130] sm:$0xff]
      %v319 = vld [vmem:[%s272 + $0x138] sm:$0xff]
      %v320 = vld [vmem:[%s272 + $0x140] sm:$0xff]
      %v321 = vld [vmem:[%s272 + $0x148] sm:$0xff]
      %v322 = vld [vmem:[%s272 + $0x150] sm:$0xff]
      %v323 = vld [vmem:[%s272 + $0x158] sm:$0xff]
      %v324 = vld [vmem:[%s272 + $0x160] sm:$0xff]
      %v325 = vld [vmem:[%s272 + $0x168] sm:$0xff]
      %v326 = vld [vmem:[%s272 + $0x170] sm:$0xff]
      %v327 = vld [vmem:[%s272 + $0x178] sm:$0xff]
      %v328 = vld [vmem:[%s272 + $0x180] sm:$0xff]
      %v329 = vld [vmem:[%s272 + $0x188] sm:$0xff]
      %v330 = vld [vmem:[%s272 + $0x190] sm:$0xff]
      %v331 = vld [vmem:[%s272 + $0x198] sm:$0xff]
      %v332 = vld [vmem:[%s272 + $0x1a0] sm:$0xff]
      %v333 = vld [vmem:[%s272 + $0x1a8] sm:$0xff]
      %v334 = vld [vmem:[%s272 + $0x1b0] sm:$0xff]
      %v335 = vld [vmem:[%s272 + $0x1b8] sm:$0xff]
      %v336 = vld [vmem:[%s272 + $0x1c0] sm:$0xff]
      %v337 = vld [vmem:[%s272 + $0x1c8] sm:$0xff]
      %v338 = vld [vmem:[%s272 + $0x1d0] sm:$0xff]
      %v339 = vld [vmem:[%s272 + $0x1d8] sm:$0xff]
      %v340 = vld [vmem:[%s272 + $0x1e0] sm:$0xff]
      %v341 = vld [vmem:[%s272 + $0x1e8] sm:$0xff]
      %v342 = vld [vmem:[%s272 + $0x1f0] sm:$0xff]
      %v343 = vld [vmem:[%s272 + $0x1f8] sm:$0xff]
      %v346 = vunpack.c.l.b16 %v278
      %v347 = vunpack.c.h.b16 %v278
      %v348 = vunpack.c.l.b16 %v279
      %v349 = vunpack.c.h.b16 %v279
      %v350 = vpack.c.b16 %v348, %v346
      %v351 = vpack.c.b16 %v349, %v347
      %v418 = vunpack.c.l.b16 %v280
      %v419 = vunpack.c.h.b16 %v280
      %v420 = vunpack.c.l.b16 %v281
      %v421 = vunpack.c.h.b16 %v281
      %v422 = vunpack.c.l.b16 %v282
      %v423 = vunpack.c.h.b16 %v282
      %v424 = vunpack.c.l.b16 %v283
      %v425 = vunpack.c.h.b16 %v283
      %v426 = vunpack.c.l.b16 %v284
      %v427 = vunpack.c.h.b16 %v284
      %v428 = vunpack.c.l.b16 %v285
      %v429 = vunpack.c.h.b16 %v285
      %v430 = vunpack.c.l.b16 %v286
      %v431 = vunpack.c.h.b16 %v286
      %v432 = vunpack.c.l.b16 %v287
      %v433 = vunpack.c.h.b16 %v287
      %v434 = vunpack.c.l.b16 %v288
      %v435 = vunpack.c.h.b16 %v288
      %v436 = vunpack.c.l.b16 %v289
      %v437 = vunpack.c.h.b16 %v289
      %v438 = vunpack.c.l.b16 %v290
      %v439 = vunpack.c.h.b16 %v290
      %v440 = vunpack.c.l.b16 %v291
      %v441 = vunpack.c.h.b16 %v291
      %v442 = vunpack.c.l.b16 %v292
      %v443 = vunpack.c.h.b16 %v292
      %v444 = vunpack.c.l.b16 %v293
      %v445 = vunpack.c.h.b16 %v293
      %v446 = vunpack.c.l.b16 %v294
      %v447 = vunpack.c.h.b16 %v294
      %v448 = vunpack.c.l.b16 %v295
      %v449 = vunpack.c.h.b16 %v295
      %v450 = vunpack.c.l.b16 %v296
      %v451 = vunpack.c.h.b16 %v296
      %v452 = vunpack.c.l.b16 %v297
      %v453 = vunpack.c.h.b16 %v297
      %v454 = vunpack.c.l.b16 %v298
      %v455 = vunpack.c.h.b16 %v298
      %v456 = vunpack.c.l.b16 %v299
      %v457 = vunpack.c.h.b16 %v299
      %v458 = vunpack.c.l.b16 %v300
      %v459 = vunpack.c.h.b16 %v300
      %v460 = vunpack.c.l.b16 %v301
      %v461 = vunpack.c.h.b16 %v301
      %v462 = vunpack.c.l.b16 %v302
      %v463 = vunpack.c.h.b16 %v302
      %v464 = vunpack.c.l.b16 %v303
      %v465 = vunpack.c.h.b16 %v303
      %v466 = vunpack.c.l.b16 %v304
      %v467 = vunpack.c.h.b16 %v304
      %v468 = vunpack.c.l.b16 %v305
      %v469 = vunpack.c.h.b16 %v305
      %v470 = vunpack.c.l.b16 %v306
      %v471 = vunpack.c.h.b16 %v306
      %v472 = vunpack.c.l.b16 %v307
      %v473 = vunpack.c.h.b16 %v307
      %v474 = vunpack.c.l.b16 %v308
      %v475 = vunpack.c.h.b16 %v308
      %v476 = vunpack.c.l.b16 %v309
      %v477 = vunpack.c.h.b16 %v309
      %v478 = vunpack.c.l.b16 %v310
      %v479 = vunpack.c.h.b16 %v310
      %v480 = vunpack.c.l.b16 %v311
      %v481 = vunpack.c.h.b16 %v311
      %v482 = vunpack.c.l.b16 %v312
      %v483 = vunpack.c.h.b16 %v312
      %v484 = vunpack.c.l.b16 %v313
      %v485 = vunpack.c.h.b16 %v313
      %v486 = vunpack.c.l.b16 %v314
      %v487 = vunpack.c.h.b16 %v314
      %v488 = vunpack.c.l.b16 %v315
      %v489 = vunpack.c.h.b16 %v315
      %v490 = vunpack.c.l.b16 %v316
      %v491 = vunpack.c.h.b16 %v316
      %v492 = vunpack.c.l.b16 %v317
      %v493 = vunpack.c.h.b16 %v317
      %v494 = vunpack.c.l.b16 %v318
      %v495 = vunpack.c.h.b16 %v318
      %v496 = vunpack.c.l.b16 %v319
      %v497 = vunpack.c.h.b16 %v319
      %v498 = vunpack.c.l.b16 %v320
      %v499 = vunpack.c.h.b16 %v320
      %v500 = vunpack.c.l.b16 %v321
      %v501 = vunpack.c.h.b16 %v321
      %v502 = vunpack.c.l.b16 %v322
      %v503 = vunpack.c.h.b16 %v322
      %v504 = vunpack.c.l.b16 %v323
      %v505 = vunpack.c.h.b16 %v323
      %v506 = vunpack.c.l.b16 %v324
      %v507 = vunpack.c.h.b16 %v324
      %v508 = vunpack.c.l.b16 %v325
      %v509 = vunpack.c.h.b16 %v325
      %v510 = vunpack.c.l.b16 %v326
      %v511 = vunpack.c.h.b16 %v326
      %v512 = vunpack.c.l.b16 %v327
      %v513 = vunpack.c.h.b16 %v327
      %v514 = vunpack.c.l.b16 %v328
      %v515 = vunpack.c.h.b16 %v328
      %v516 = vunpack.c.l.b16 %v329
      %v517 = vunpack.c.h.b16 %v329
      %v518 = vunpack.c.l.b16 %v330
      %v519 = vunpack.c.h.b16 %v330
      %v520 = vunpack.c.l.b16 %v331
      %v521 = vunpack.c.h.b16 %v331
      %v522 = vunpack.c.l.b16 %v332
      %v523 = vunpack.c.h.b16 %v332
      %v524 = vunpack.c.l.b16 %v333
      %v525 = vunpack.c.h.b16 %v333
      %v526 = vunpack.c.l.b16 %v334
      %v527 = vunpack.c.h.b16 %v334
      %v528 = vunpack.c.l.b16 %v335
      %v529 = vunpack.c.h.b16 %v335
      %v530 = vunpack.c.l.b16 %v336
      %v531 = vunpack.c.h.b16 %v336
      %v532 = vunpack.c.l.b16 %v337
      %v533 = vunpack.c.h.b16 %v337
      %v534 = vunpack.c.l.b16 %v338
      %v535 = vunpack.c.h.b16 %v338
      %v536 = vunpack.c.l.b16 %v339
      %v537 = vunpack.c.h.b16 %v339
      %v538 = vunpack.c.l.b16 %v340
      %v539 = vunpack.c.h.b16 %v340
      %v540 = vunpack.c.l.b16 %v341
      %v541 = vunpack.c.h.b16 %v341
      %v542 = vunpack.c.l.b16 %v342
      %v543 = vunpack.c.h.b16 %v342
      %v544 = vunpack.c.l.b16 %v343
      %v545 = vunpack.c.h.b16 %v343
      %v546 = vpack.c.b16 %v422, %v418
      %v547 = vpack.c.b16 %v423, %v419
      %v548 = vpack.c.b16 %v424, %v420
      %v549 = vpack.c.b16 %v425, %v421
      %v550 = vpack.c.b16 %v430, %v426
      %v551 = vpack.c.b16 %v431, %v427
      %v552 = vpack.c.b16 %v432, %v428
      %v553 = vpack.c.b16 %v433, %v429
      %v554 = vpack.c.b16 %v438, %v434
      %v555 = vpack.c.b16 %v439, %v435
      %v556 = vpack.c.b16 %v440, %v436
      %v557 = vpack.c.b16 %v441, %v437
      %v558 = vpack.c.b16 %v446, %v442
      %v559 = vpack.c.b16 %v447, %v443
      %v560 = vpack.c.b16 %v448, %v444
      %v561 = vpack.c.b16 %v449, %v445
      %v562 = vpack.c.b16 %v454, %v450
      %v563 = vpack.c.b16 %v455, %v451
      %v564 = vpack.c.b16 %v456, %v452
      %v565 = vpack.c.b16 %v457, %v453
      %v566 = vpack.c.b16 %v462, %v458
      %v567 = vpack.c.b16 %v463, %v459
      %v568 = vpack.c.b16 %v464, %v460
      %v569 = vpack.c.b16 %v465, %v461
      %v570 = vpack.c.b16 %v470, %v466
      %v571 = vpack.c.b16 %v471, %v467
      %v572 = vpack.c.b16 %v472, %v468
      %v573 = vpack.c.b16 %v473, %v469
      %v574 = vpack.c.b16 %v478, %v474
      %v575 = vpack.c.b16 %v479, %v475
      %v576 = vpack.c.b16 %v480, %v476
      %v577 = vpack.c.b16 %v481, %v477
      %v578 = vpack.c.b16 %v486, %v482
      %v579 = vpack.c.b16 %v487, %v483
      %v580 = vpack.c.b16 %v488, %v484
      %v581 = vpack.c.b16 %v489, %v485
      %v582 = vpack.c.b16 %v494, %v490
      %v583 = vpack.c.b16 %v495, %v491
      %v584 = vpack.c.b16 %v496, %v492
      %v585 = vpack.c.b16 %v497, %v493
      %v586 = vpack.c.b16 %v502, %v498
      %v587 = vpack.c.b16 %v503, %v499
      %v588 = vpack.c.b16 %v504, %v500
      %v589 = vpack.c.b16 %v505, %v501
      %v590 = vpack.c.b16 %v510, %v506
      %v591 = vpack.c.b16 %v511, %v507
      %v592 = vpack.c.b16 %v512, %v508
      %v593 = vpack.c.b16 %v513, %v509
      %v594 = vpack.c.b16 %v518, %v514
      %v595 = vpack.c.b16 %v519, %v515
      %v596 = vpack.c.b16 %v520, %v516
      %v597 = vpack.c.b16 %v521, %v517
      %v598 = vpack.c.b16 %v526, %v522
      %v599 = vpack.c.b16 %v527, %v523
      %v600 = vpack.c.b16 %v528, %v524
      %v601 = vpack.c.b16 %v529, %v525
      %v602 = vpack.c.b16 %v534, %v530
      %v603 = vpack.c.b16 %v535, %v531
      %v604 = vpack.c.b16 %v536, %v532
      %v605 = vpack.c.b16 %v537, %v533
      %v606 = vpack.c.b16 %v542, %v538
      %v607 = vpack.c.b16 %v543, %v539
      %v608 = vpack.c.b16 %v544, %v540
      %v609 = vpack.c.b16 %v545, %v541
      %674 = vmatprep.subr.bf16.mxu0 %v575
      %675 = vmatpush1.bf16.msra.mxu0 %v574
      %676 = vmatprep.subr.bf16.mxu0 %v571
      %677 = vmatpush1.bf16.msra.mxu0 %v570
      %678 = vmatprep.subr.bf16.mxu0 %v567
      %679 = vmatpush1.bf16.msra.mxu0 %v566
      %680 = vmatprep.subr.bf16.mxu0 %v563
      %681 = vmatpush1.bf16.msra.mxu0 %v562
      %682 = vmatprep.subr.bf16.mxu0 %v559
      %683 = vmatpush1.bf16.msra.mxu0 %v558
      %684 = vmatprep.subr.bf16.mxu0 %v555
      %685 = vmatpush1.bf16.msra.mxu0 %v554
      %686 = vmatprep.subr.bf16.mxu0 %v551
      %687 = vmatpush1.bf16.msra.mxu0 %v550
      %688 = vmatprep.subr.bf16.mxu0 %v547
      %689 = vmatpush1.bf16.msra.mxu0 %v546
      %690 = vmatprep.subr.bf16.mxu0 %v607
      %691 = vmatpush2.bf16.msra.mxu0 %v606
      %692 = vmatprep.subr.bf16.mxu0 %v603
      %693 = vmatpush2.bf16.msra.mxu0 %v602
      %694 = vmatprep.subr.bf16.mxu0 %v599
      %695 = vmatpush2.bf16.msra.mxu0 %v598
      %696 = vmatprep.subr.bf16.mxu0 %v595
      %697 = vmatpush2.bf16.msra.mxu0 %v594
      %698 = vmatprep.subr.bf16.mxu0 %v591
      %699 = vmatpush2.bf16.msra.mxu0 %v590
      %700 = vmatprep.subr.bf16.mxu0 %v587
      %701 = vmatpush2.bf16.msra.mxu0 %v586
      %702 = vmatprep.subr.bf16.mxu0 %v583
      %703 = vmatpush2.bf16.msra.mxu0 %v582
      %704 = vmatprep.subr.bf16.mxu0 %v579
      %705 = vmatpush2.bf16.msra.mxu0 %v578
      %706 = vmatprep.mubr.bf16.mxu0 %v351
      %707 = vmatmul.mubr.bf16.gmra.mxu0 %v350
      %v708 = vpop.f32.mrf.mxu0
      %v709 = vadd.f32 0.0, %v708
      %v710 = vpop.f32.mrf.mxu0
      %v711 = vadd.f32 0.0, %v710
      %v712 = vpop.f32.mrf.mxu0
      %v713 = vadd.f32 0.0, %v712
      %v714 = vpop.f32.mrf.mxu0
      %v715 = vadd.f32 0.0, %v714
      %716 = vdwg.mxu0
      %717 = vmatprep.subr.bf16.mxu0 %v577
      %718 = vmatpush1.bf16.msra.mxu0 %v576
      %719 = vmatprep.subr.bf16.mxu0 %v573
      %720 = vmatpush1.bf16.msra.mxu0 %v572
      %721 = vmatprep.subr.bf16.mxu0 %v569
      %722 = vmatpush1.bf16.msra.mxu0 %v568
      %723 = vmatprep.subr.bf16.mxu0 %v565
      %724 = vmatpush1.bf16.msra.mxu0 %v564
      %725 = vmatprep.subr.bf16.mxu0 %v561
      %726 = vmatpush1.bf16.msra.mxu0 %v560
      %727 = vmatprep.subr.bf16.mxu0 %v557
      %728 = vmatpush1.bf16.msra.mxu0 %v556
      %729 = vmatprep.subr.bf16.mxu0 %v553
      %730 = vmatpush1.bf16.msra.mxu0 %v552
      %731 = vmatprep.subr.bf16.mxu0 %v549
      %732 = vmatpush1.bf16.msra.mxu0 %v548
      %733 = vmatprep.subr.bf16.mxu0 %v609
      %734 = vmatpush2.bf16.msra.mxu0 %v608
      %735 = vmatprep.subr.bf16.mxu0 %v605
      %736 = vmatpush2.bf16.msra.mxu0 %v604
      %737 = vmatprep.subr.bf16.mxu0 %v601
      %738 = vmatpush2.bf16.msra.mxu0 %v600
      %739 = vmatprep.subr.bf16.mxu0 %v597
      %740 = vmatpush2.bf16.msra.mxu0 %v596
      %741 = vmatprep.subr.bf16.mxu0 %v593
      %742 = vmatpush2.bf16.msra.mxu0 %v592
      %743 = vmatprep.subr.bf16.mxu0 %v589
      %744 = vmatpush2.bf16.msra.mxu0 %v588
      %745 = vmatprep.subr.bf16.mxu0 %v585
      %746 = vmatpush2.bf16.msra.mxu0 %v584
      %747 = vmatprep.subr.bf16.mxu0 %v581
      %748 = vmatpush2.bf16.msra.mxu0 %v580
      %749 = vmatprep.mubr.bf16.mxu0 %v351
      %750 = vmatmul.mubr.bf16.gmra.mxu0 %v350
      %v751 = vpop.f32.mrf.mxu0
      %v752 = vadd.f32 0.0, %v751
      %v753 = vpop.f32.mrf.mxu0
      %v754 = vadd.f32 0.0, %v753
      %v755 = vpop.f32.mrf.mxu0
      %v756 = vadd.f32 0.0, %v755
      %v757 = vpop.f32.mrf.mxu0
      %v758 = vadd.f32 0.0, %v757
      %759 = vdwg.mxu0
      %v760 = vmax.f32 %v709, %v711
      %v761 = vmax.f32 %v713, %v715
      %v762 = vmax.f32 %v752, %v754
      %v763 = vmax.f32 %v756, %v758
      %v764 = vmax.f32 %v760, %v762
      %v765 = vmax.f32 %v761, %v763
      %v766 = vld [vmem:[%s2] sm:$0xff]
      %v767 = vld [vmem:[%s2 + $0x8] sm:$0x1]
      %769 = vset.pattern.permute.xlu0 0
      %770 = vperm.xlu0 %769, %v766
      %v771 = vpop.permute.xlu0 %770
      %774 = vset.pattern.permute.xlu0 0
      %775 = vperm.xlu0 %774, %v767
      %v776 = vpop.permute.xlu0 %775
      %v778 = vadd.f32 %v764, %v771
      %v779 = vadd.f32 %v765, %v776
      %v780 = vmax.f32 %v778, 0.0
      %v781 = vmax.f32 %v779, 0.0
      %v782 = vld [vmem:[%s4] sm:$0x1]
      %v783 = vpack.c.bf16 %v780, %v780
      %v784 = vld [vmem:[%s3] sm:$0xf]
      %v785 = vld [vmem:[%s3 + $0x4] sm:$0xf]
      %v786 = vld [vmem:[%s3 + $0x8] sm:$0xf]
      %v787 = vld [vmem:[%s3 + $0xc] sm:$0xf]
      %v788 = vld [vmem:[%s3 + $0x10] sm:$0xf]
      %v789 = vld [vmem:[%s3 + $0x14] sm:$0xf]
      %v790 = vld [vmem:[%s3 + $0x18] sm:$0xf]
      %v791 = vld [vmem:[%s3 + $0x1c] sm:$0xf]
      %v792 = vld [vmem:[%s3 + $0x20] sm:$0xf]
      %v793 = vld [vmem:[%s3 + $0x24] sm:$0xf]
      %v794 = vld [vmem:[%s3 + $0x28] sm:$0xf]
      %v795 = vld [vmem:[%s3 + $0x2c] sm:$0xf]
      %v796 = vld [vmem:[%s3 + $0x30] sm:$0xf]
      %v797 = vld [vmem:[%s3 + $0x34] sm:$0xf]
      %v798 = vld [vmem:[%s3 + $0x38] sm:$0xf]
      %v799 = vld [vmem:[%s3 + $0x3c] sm:$0xf]
      %v816 = vunpack.c.l.b16 %v784
      %v817 = vunpack.c.l.b16 %v785
      %v818 = vunpack.c.l.b16 %v786
      %v819 = vunpack.c.l.b16 %v787
      %v820 = vunpack.c.l.b16 %v788
      %v821 = vunpack.c.l.b16 %v789
      %v822 = vunpack.c.l.b16 %v790
      %v823 = vunpack.c.l.b16 %v791
      %v824 = vunpack.c.l.b16 %v792
      %v825 = vunpack.c.l.b16 %v793
      %v826 = vunpack.c.l.b16 %v794
      %v827 = vunpack.c.l.b16 %v795
      %v828 = vunpack.c.l.b16 %v796
      %v829 = vunpack.c.l.b16 %v797
      %v830 = vunpack.c.l.b16 %v798
      %v831 = vunpack.c.l.b16 %v799
      %v832 = vpack.c.b16 %v817, %v816
      %v833 = vpack.c.b16 %v819, %v818
      %v834 = vpack.c.b16 %v821, %v820
      %v835 = vpack.c.b16 %v823, %v822
      %v836 = vpack.c.b16 %v825, %v824
      %v837 = vpack.c.b16 %v827, %v826
      %v838 = vpack.c.b16 %v829, %v828
      %v839 = vpack.c.b16 %v831, %v830
      %848 = vmatprep.subr.bf16.mxu0 0
      %849 = vmatpush1.bf16.msra.mxu0 %v839
      %850 = vmatprep.subr.bf16.mxu0 0
      %851 = vmatpush1.bf16.msra.mxu0 %v838
      %852 = vmatprep.subr.bf16.mxu0 0
      %853 = vmatpush1.bf16.msra.mxu0 %v837
      %854 = vmatprep.subr.bf16.mxu0 0
      %855 = vmatpush1.bf16.msra.mxu0 %v836
      %856 = vmatprep.subr.bf16.mxu0 0
      %857 = vmatpush1.bf16.msra.mxu0 %v835
      %858 = vmatprep.subr.bf16.mxu0 0
      %859 = vmatpush1.bf16.msra.mxu0 %v834
      %860 = vmatprep.subr.bf16.mxu0 0
      %861 = vmatpush1.bf16.msra.mxu0 %v833
      %862 = vmatprep.subr.bf16.mxu0 0
      %863 = vmatpush1.bf16.msra.mxu0 %v832
      %864 = vmatprep.subr.bf16.mxu0 0
      %865 = vmatpush2.bf16.msra.mxu0 0
      %866 = vmatprep.subr.bf16.mxu0 0
      %867 = vmatpush2.bf16.msra.mxu0 0
      %868 = vmatprep.subr.bf16.mxu0 0
      %869 = vmatpush2.bf16.msra.mxu0 0
      %870 = vmatprep.subr.bf16.mxu0 0
      %871 = vmatpush2.bf16.msra.mxu0 0
      %872 = vmatprep.subr.bf16.mxu0 0
      %873 = vmatpush2.bf16.msra.mxu0 0
      %874 = vmatprep.subr.bf16.mxu0 0
      %875 = vmatpush2.bf16.msra.mxu0 0
      %876 = vmatprep.subr.bf16.mxu0 0
      %877 = vmatpush2.bf16.msra.mxu0 0
      %878 = vmatprep.subr.bf16.mxu0 0
      %879 = vmatpush2.bf16.msra.mxu0 0
      %880 = vmatprep.mubr.bf16.mxu0 0
      %881 = vmatmul.mubr.bf16.gmra.mxu0 %v783
      %v882 = vpop.f32.mrf.mxu0
      %v883 = vadd.f32 0.0, %v882
      %v884 = vpop.f32.mrf.mxu0
      %v885 = vpop.f32.mrf.mxu0
      %v886 = vpop.f32.mrf.mxu0
      %887 = vdwg.mxu0
      %v888 = vadd.f32 %v782, %v883
      %s889 = scalar_lea.vmem %s3, 64
      %v890 = vld [vmem:[%s889] sm:$0xf]
      %v891 = vld [vmem:[%s889 + $0x4] sm:$0xf]
      %v892 = vld [vmem:[%s889 + $0x8] sm:$0xf]
      %v893 = vld [vmem:[%s889 + $0xc] sm:$0xf]
      %v894 = vld [vmem:[%s889 + $0x10] sm:$0xf]
      %v895 = vld [vmem:[%s889 + $0x14] sm:$0xf]
      %v896 = vld [vmem:[%s889 + $0x18] sm:$0xf]
      %v897 = vld [vmem:[%s889 + $0x1c] sm:$0xf]
      %v898 = vld [vmem:[%s889 + $0x20] sm:$0xf]
      %v899 = vld [vmem:[%s889 + $0x24] sm:$0xf]
      %v900 = vld [vmem:[%s889 + $0x28] sm:$0xf]
      %v901 = vld [vmem:[%s889 + $0x2c] sm:$0xf]
      %v902 = vld [vmem:[%s889 + $0x30] sm:$0xf]
      %v903 = vld [vmem:[%s889 + $0x34] sm:$0xf]
      %v904 = vld [vmem:[%s889 + $0x38] sm:$0xf]
      %v905 = vld [vmem:[%s889 + $0x3c] sm:$0xf]
      %v907 = vshrl.u32 %v783, 16
      %v926 = vunpack.c.l.b16 %v890
      %v927 = vunpack.c.l.b16 %v891
      %v928 = vunpack.c.l.b16 %v892
      %v929 = vunpack.c.l.b16 %v893
      %v930 = vunpack.c.l.b16 %v894
      %v931 = vunpack.c.l.b16 %v895
      %v932 = vunpack.c.l.b16 %v896
      %v933 = vunpack.c.l.b16 %v897
      %v934 = vunpack.c.l.b16 %v898
      %v935 = vunpack.c.l.b16 %v899
      %v936 = vunpack.c.l.b16 %v900
      %v937 = vunpack.c.l.b16 %v901
      %v938 = vunpack.c.l.b16 %v902
      %v939 = vunpack.c.l.b16 %v903
      %v940 = vunpack.c.l.b16 %v904
      %v941 = vunpack.c.l.b16 %v905
      %v942 = vpack.c.b16 %v927, %v926
      %v943 = vpack.c.b16 %v929, %v928
      %v944 = vpack.c.b16 %v931, %v930
      %v945 = vpack.c.b16 %v933, %v932
      %v946 = vpack.c.b16 %v935, %v934
      %v947 = vpack.c.b16 %v937, %v936
      %v948 = vpack.c.b16 %v939, %v938
      %v949 = vpack.c.b16 %v941, %v940
      %958 = vmatprep.subr.bf16.mxu0 0
      %959 = vmatpush1.bf16.msra.mxu0 %v949
      %960 = vmatprep.subr.bf16.mxu0 0
      %961 = vmatpush1.bf16.msra.mxu0 %v948
      %962 = vmatprep.subr.bf16.mxu0 0
      %963 = vmatpush1.bf16.msra.mxu0 %v947
      %964 = vmatprep.subr.bf16.mxu0 0
      %965 = vmatpush1.bf16.msra.mxu0 %v946
      %966 = vmatprep.subr.bf16.mxu0 0
      %967 = vmatpush1.bf16.msra.mxu0 %v945
      %968 = vmatprep.subr.bf16.mxu0 0
      %969 = vmatpush1.bf16.msra.mxu0 %v944
      %970 = vmatprep.subr.bf16.mxu0 0
      %971 = vmatpush1.bf16.msra.mxu0 %v943
      %972 = vmatprep.subr.bf16.mxu0 0
      %973 = vmatpush1.bf16.msra.mxu0 %v942
      %974 = vmatprep.subr.bf16.mxu0 0
      %975 = vmatpush2.bf16.msra.mxu0 0
      %976 = vmatprep.subr.bf16.mxu0 0
      %977 = vmatpush2.bf16.msra.mxu0 0
      %978 = vmatprep.subr.bf16.mxu0 0
      %979 = vmatpush2.bf16.msra.mxu0 0
      %980 = vmatprep.subr.bf16.mxu0 0
      %981 = vmatpush2.bf16.msra.mxu0 0
      %982 = vmatprep.subr.bf16.mxu0 0
      %983 = vmatpush2.bf16.msra.mxu0 0
      %984 = vmatprep.subr.bf16.mxu0 0
      %985 = vmatpush2.bf16.msra.mxu0 0
      %986 = vmatprep.subr.bf16.mxu0 0
      %987 = vmatpush2.bf16.msra.mxu0 0
      %988 = vmatprep.subr.bf16.mxu0 0
      %989 = vmatpush2.bf16.msra.mxu0 0
      %990 = vmatprep.mubr.bf16.mxu0 0
      %991 = vmatmul.mubr.bf16.gmra.mxu0 %v907
      %v992 = vpop.f32.mrf.mxu0
      %v993 = vadd.f32 0.0, %v992
      %v994 = vpop.f32.mrf.mxu0
      %v995 = vpop.f32.mrf.mxu0
      %v996 = vpop.f32.mrf.mxu0
      %997 = vdwg.mxu0
      %v998 = vadd.f32 %v888, %v993
      %s999 = scalar_lea.vmem %s3, 128
      %v1000 = vld [vmem:[%s999] sm:$0xf]
      %v1001 = vld [vmem:[%s999 + $0x4] sm:$0xf]
      %v1002 = vld [vmem:[%s999 + $0x8] sm:$0xf]
      %v1003 = vld [vmem:[%s999 + $0xc] sm:$0xf]
      %v1004 = vld [vmem:[%s999 + $0x10] sm:$0xf]
      %v1005 = vld [vmem:[%s999 + $0x14] sm:$0xf]
      %v1006 = vld [vmem:[%s999 + $0x18] sm:$0xf]
      %v1007 = vld [vmem:[%s999 + $0x1c] sm:$0xf]
      %v1008 = vld [vmem:[%s999 + $0x20] sm:$0xf]
      %v1009 = vld [vmem:[%s999 + $0x24] sm:$0xf]
      %v1010 = vld [vmem:[%s999 + $0x28] sm:$0xf]
      %v1011 = vld [vmem:[%s999 + $0x2c] sm:$0xf]
      %v1012 = vld [vmem:[%s999 + $0x30] sm:$0xf]
      %v1013 = vld [vmem:[%s999 + $0x34] sm:$0xf]
      %v1014 = vld [vmem:[%s999 + $0x38] sm:$0xf]
      %v1015 = vld [vmem:[%s999 + $0x3c] sm:$0xf]
      %v1017 = vrot.slane %v783, 1
      %v1035 = vunpack.c.l.b16 %v1000
      %v1036 = vunpack.c.l.b16 %v1001
      %v1037 = vunpack.c.l.b16 %v1002
      %v1038 = vunpack.c.l.b16 %v1003
      %v1039 = vunpack.c.l.b16 %v1004
      %v1040 = vunpack.c.l.b16 %v1005
      %v1041 = vunpack.c.l.b16 %v1006
      %v1042 = vunpack.c.l.b16 %v1007
      %v1043 = vunpack.c.l.b16 %v1008
      %v1044 = vunpack.c.l.b16 %v1009
      %v1045 = vunpack.c.l.b16 %v1010
      %v1046 = vunpack.c.l.b16 %v1011
      %v1047 = vunpack.c.l.b16 %v1012
      %v1048 = vunpack.c.l.b16 %v1013
      %v1049 = vunpack.c.l.b16 %v1014
      %v1050 = vunpack.c.l.b16 %v1015
      %v1051 = vpack.c.b16 %v1036, %v1035
      %v1052 = vpack.c.b16 %v1038, %v1037
      %v1053 = vpack.c.b16 %v1040, %v1039
      %v1054 = vpack.c.b16 %v1042, %v1041
      %v1055 = vpack.c.b16 %v1044, %v1043
      %v1056 = vpack.c.b16 %v1046, %v1045
      %v1057 = vpack.c.b16 %v1048, %v1047
      %v1058 = vpack.c.b16 %v1050, %v1049
      %1067 = vmatprep.subr.bf16.mxu0 0
      %1068 = vmatpush1.bf16.msra.mxu0 %v1058
      %1069 = vmatprep.subr.bf16.mxu0 0
      %1070 = vmatpush1.bf16.msra.mxu0 %v1057
      %1071 = vmatprep.subr.bf16.mxu0 0
      %1072 = vmatpush1.bf16.msra.mxu0 %v1056
      %1073 = vmatprep.subr.bf16.mxu0 0
      %1074 = vmatpush1.bf16.msra.mxu0 %v1055
      %1075 = vmatprep.subr.bf16.mxu0 0
      %1076 = vmatpush1.bf16.msra.mxu0 %v1054
      %1077 = vmatprep.subr.bf16.mxu0 0
      %1078 = vmatpush1.bf16.msra.mxu0 %v1053
      %1079 = vmatprep.subr.bf16.mxu0 0
      %1080 = vmatpush1.bf16.msra.mxu0 %v1052
      %1081 = vmatprep.subr.bf16.mxu0 0
      %1082 = vmatpush1.bf16.msra.mxu0 %v1051
      %1083 = vmatprep.subr.bf16.mxu0 0
      %1084 = vmatpush2.bf16.msra.mxu0 0
      %1085 = vmatprep.subr.bf16.mxu0 0
      %1086 = vmatpush2.bf16.msra.mxu0 0
      %1087 = vmatprep.subr.bf16.mxu0 0
      %1088 = vmatpush2.bf16.msra.mxu0 0
      %1089 = vmatprep.subr.bf16.mxu0 0
      %1090 = vmatpush2.bf16.msra.mxu0 0
      %1091 = vmatprep.subr.bf16.mxu0 0
      %1092 = vmatpush2.bf16.msra.mxu0 0
      %1093 = vmatprep.subr.bf16.mxu0 0
      %1094 = vmatpush2.bf16.msra.mxu0 0
      %1095 = vmatprep.subr.bf16.mxu0 0
      %1096 = vmatpush2.bf16.msra.mxu0 0
      %1097 = vmatprep.subr.bf16.mxu0 0
      %1098 = vmatpush2.bf16.msra.mxu0 0
      %1099 = vmatprep.mubr.bf16.mxu0 0
      %1100 = vmatmul.mubr.bf16.gmra.mxu0 %v1017
      %v1101 = vpop.f32.mrf.mxu0
      %v1102 = vadd.f32 0.0, %v1101
      %v1103 = vpop.f32.mrf.mxu0
      %v1104 = vpop.f32.mrf.mxu0
      %v1105 = vpop.f32.mrf.mxu0
      %1106 = vdwg.mxu0
      %v1107 = vadd.f32 %v998, %v1102
      %s1108 = scalar_lea.vmem %s3, 192
      %v1109 = vld [vmem:[%s1108] sm:$0xf]
      %v1110 = vld [vmem:[%s1108 + $0x4] sm:$0xf]
      %v1111 = vld [vmem:[%s1108 + $0x8] sm:$0xf]
      %v1112 = vld [vmem:[%s1108 + $0xc] sm:$0xf]
      %v1113 = vld [vmem:[%s1108 + $0x10] sm:$0xf]
      %v1114 = vld [vmem:[%s1108 + $0x14] sm:$0xf]
      %v1115 = vld [vmem:[%s1108 + $0x18] sm:$0xf]
      %v1116 = vld [vmem:[%s1108 + $0x1c] sm:$0xf]
      %v1117 = vld [vmem:[%s1108 + $0x20] sm:$0xf]
      %v1118 = vld [vmem:[%s1108 + $0x24] sm:$0xf]
      %v1119 = vld [vmem:[%s1108 + $0x28] sm:$0xf]
      %v1120 = vld [vmem:[%s1108 + $0x2c] sm:$0xf]
      %v1121 = vld [vmem:[%s1108 + $0x30] sm:$0xf]
      %v1122 = vld [vmem:[%s1108 + $0x34] sm:$0xf]
      %v1123 = vld [vmem:[%s1108 + $0x38] sm:$0xf]
      %v1124 = vld [vmem:[%s1108 + $0x3c] sm:$0xf]
      %v1125 = vrot.slane %v907, 1
      %v1143 = vunpack.c.l.b16 %v1109
      %v1144 = vunpack.c.l.b16 %v1110
      %v1145 = vunpack.c.l.b16 %v1111
      %v1146 = vunpack.c.l.b16 %v1112
      %v1147 = vunpack.c.l.b16 %v1113
      %v1148 = vunpack.c.l.b16 %v1114
      %v1149 = vunpack.c.l.b16 %v1115
      %v1150 = vunpack.c.l.b16 %v1116
      %v1151 = vunpack.c.l.b16 %v1117
      %v1152 = vunpack.c.l.b16 %v1118
      %v1153 = vunpack.c.l.b16 %v1119
      %v1154 = vunpack.c.l.b16 %v1120
      %v1155 = vunpack.c.l.b16 %v1121
      %v1156 = vunpack.c.l.b16 %v1122
      %v1157 = vunpack.c.l.b16 %v1123
      %v1158 = vunpack.c.l.b16 %v1124
      %v1159 = vpack.c.b16 %v1144, %v1143
      %v1160 = vpack.c.b16 %v1146, %v1145
      %v1161 = vpack.c.b16 %v1148, %v1147
      %v1162 = vpack.c.b16 %v1150, %v1149
      %v1163 = vpack.c.b16 %v1152, %v1151
      %v1164 = vpack.c.b16 %v1154, %v1153
      %v1165 = vpack.c.b16 %v1156, %v1155
      %v1166 = vpack.c.b16 %v1158, %v1157
      %1175 = vmatprep.subr.bf16.mxu0 0
      %1176 = vmatpush1.bf16.msra.mxu0 %v1166
      %1177 = vmatprep.subr.bf16.mxu0 0
      %1178 = vmatpush1.bf16.msra.mxu0 %v1165
      %1179 = vmatprep.subr.bf16.mxu0 0
      %1180 = vmatpush1.bf16.msra.mxu0 %v1164
      %1181 = vmatprep.subr.bf16.mxu0 0
      %1182 = vmatpush1.bf16.msra.mxu0 %v1163
      %1183 = vmatprep.subr.bf16.mxu0 0
      %1184 = vmatpush1.bf16.msra.mxu0 %v1162
      %1185 = vmatprep.subr.bf16.mxu0 0
      %1186 = vmatpush1.bf16.msra.mxu0 %v1161
      %1187 = vmatprep.subr.bf16.mxu0 0
      %1188 = vmatpush1.bf16.msra.mxu0 %v1160
      %1189 = vmatprep.subr.bf16.mxu0 0
      %1190 = vmatpush1.bf16.msra.mxu0 %v1159
      %1191 = vmatprep.subr.bf16.mxu0 0
      %1192 = vmatpush2.bf16.msra.mxu0 0
      %1193 = vmatprep.subr.bf16.mxu0 0
      %1194 = vmatpush2.bf16.msra.mxu0 0
      %1195 = vmatprep.subr.bf16.mxu0 0
      %1196 = vmatpush2.bf16.msra.mxu0 0
      %1197 = vmatprep.subr.bf16.mxu0 0
      %1198 = vmatpush2.bf16.msra.mxu0 0
      %1199 = vmatprep.subr.bf16.mxu0 0
      %1200 = vmatpush2.bf16.msra.mxu0 0
      %1201 = vmatprep.subr.bf16.mxu0 0
      %1202 = vmatpush2.bf16.msra.mxu0 0
      %1203 = vmatprep.subr.bf16.mxu0 0
      %1204 = vmatpush2.bf16.msra.mxu0 0
      %1205 = vmatprep.subr.bf16.mxu0 0
      %1206 = vmatpush2.bf16.msra.mxu0 0
      %1207 = vmatprep.mubr.bf16.mxu0 0
      %1208 = vmatmul.mubr.bf16.gmra.mxu0 %v1125
      %v1209 = vpop.f32.mrf.mxu0
      %v1210 = vadd.f32 0.0, %v1209
      %v1211 = vpop.f32.mrf.mxu0
      %v1212 = vpop.f32.mrf.mxu0
      %v1213 = vpop.f32.mrf.mxu0
      %1214 = vdwg.mxu0
      %v1215 = vadd.f32 %v1107, %v1210
      %s1216 = scalar_lea.vmem %s3, 256
      %v1217 = vld [vmem:[%s1216] sm:$0xf]
      %v1218 = vld [vmem:[%s1216 + $0x4] sm:$0xf]
      %v1219 = vld [vmem:[%s1216 + $0x8] sm:$0xf]
      %v1220 = vld [vmem:[%s1216 + $0xc] sm:$0xf]
      %v1221 = vld [vmem:[%s1216 + $0x10] sm:$0xf]
      %v1222 = vld [vmem:[%s1216 + $0x14] sm:$0xf]
      %v1223 = vld [vmem:[%s1216 + $0x18] sm:$0xf]
      %v1224 = vld [vmem:[%s1216 + $0x1c] sm:$0xf]
      %v1225 = vld [vmem:[%s1216 + $0x20] sm:$0xf]
      %v1226 = vld [vmem:[%s1216 + $0x24] sm:$0xf]
      %v1227 = vld [vmem:[%s1216 + $0x28] sm:$0xf]
      %v1228 = vld [vmem:[%s1216 + $0x2c] sm:$0xf]
      %v1229 = vld [vmem:[%s1216 + $0x30] sm:$0xf]
      %v1230 = vld [vmem:[%s1216 + $0x34] sm:$0xf]
      %v1231 = vld [vmem:[%s1216 + $0x38] sm:$0xf]
      %v1232 = vld [vmem:[%s1216 + $0x3c] sm:$0xf]
      %v1233 = vrot.slane %v783, 2
      %v1251 = vunpack.c.l.b16 %v1217
      %v1252 = vunpack.c.l.b16 %v1218
      %v1253 = vunpack.c.l.b16 %v1219
      %v1254 = vunpack.c.l.b16 %v1220
      %v1255 = vunpack.c.l.b16 %v1221
      %v1256 = vunpack.c.l.b16 %v1222
      %v1257 = vunpack.c.l.b16 %v1223
      %v1258 = vunpack.c.l.b16 %v1224
      %v1259 = vunpack.c.l.b16 %v1225
      %v1260 = vunpack.c.l.b16 %v1226
      %v1261 = vunpack.c.l.b16 %v1227
      %v1262 = vunpack.c.l.b16 %v1228
      %v1263 = vunpack.c.l.b16 %v1229
      %v1264 = vunpack.c.l.b16 %v1230
      %v1265 = vunpack.c.l.b16 %v1231
      %v1266 = vunpack.c.l.b16 %v1232
      %v1267 = vpack.c.b16 %v1252, %v1251
      %v1268 = vpack.c.b16 %v1254, %v1253
      %v1269 = vpack.c.b16 %v1256, %v1255
      %v1270 = vpack.c.b16 %v1258, %v1257
      %v1271 = vpack.c.b16 %v1260, %v1259
      %v1272 = vpack.c.b16 %v1262, %v1261
      %v1273 = vpack.c.b16 %v1264, %v1263
      %v1274 = vpack.c.b16 %v1266, %v1265
      %1283 = vmatprep.subr.bf16.mxu0 0
      %1284 = vmatpush1.bf16.msra.mxu0 %v1274
      %1285 = vmatprep.subr.bf16.mxu0 0
      %1286 = vmatpush1.bf16.msra.mxu0 %v1273
      %1287 = vmatprep.subr.bf16.mxu0 0
      %1288 = vmatpush1.bf16.msra.mxu0 %v1272
      %1289 = vmatprep.subr.bf16.mxu0 0
      %1290 = vmatpush1.bf16.msra.mxu0 %v1271
      %1291 = vmatprep.subr.bf16.mxu0 0
      %1292 = vmatpush1.bf16.msra.mxu0 %v1270
      %1293 = vmatprep.subr.bf16.mxu0 0
      %1294 = vmatpush1.bf16.msra.mxu0 %v1269
      %1295 = vmatprep.subr.bf16.mxu0 0
      %1296 = vmatpush1.bf16.msra.mxu0 %v1268
      %1297 = vmatprep.subr.bf16.mxu0 0
      %1298 = vmatpush1.bf16.msra.mxu0 %v1267
      %1299 = vmatprep.subr.bf16.mxu0 0
      %1300 = vmatpush2.bf16.msra.mxu0 0
      %1301 = vmatprep.subr.bf16.mxu0 0
      %1302 = vmatpush2.bf16.msra.mxu0 0
      %1303 = vmatprep.subr.bf16.mxu0 0
      %1304 = vmatpush2.bf16.msra.mxu0 0
      %1305 = vmatprep.subr.bf16.mxu0 0
      %1306 = vmatpush2.bf16.msra.mxu0 0
      %1307 = vmatprep.subr.bf16.mxu0 0
      %1308 = vmatpush2.bf16.msra.mxu0 0
      %1309 = vmatprep.subr.bf16.mxu0 0
      %1310 = vmatpush2.bf16.msra.mxu0 0
      %1311 = vmatprep.subr.bf16.mxu0 0
      %1312 = vmatpush2.bf16.msra.mxu0 0
      %1313 = vmatprep.subr.bf16.mxu0 0
      %1314 = vmatpush2.bf16.msra.mxu0 0
      %1315 = vmatprep.mubr.bf16.mxu0 0
      %1316 = vmatmul.mubr.bf16.gmra.mxu0 %v1233
      %v1317 = vpop.f32.mrf.mxu0
      %v1318 = vadd.f32 0.0, %v1317
      %v1319 = vpop.f32.mrf.mxu0
      %v1320 = vpop.f32.mrf.mxu0
      %v1321 = vpop.f32.mrf.mxu0
      %1322 = vdwg.mxu0
      %v1323 = vadd.f32 %v1215, %v1318
      %s1324 = scalar_lea.vmem %s3, 320
      %v1325 = vld [vmem:[%s1324] sm:$0xf]
      %v1326 = vld [vmem:[%s1324 + $0x4] sm:$0xf]
      %v1327 = vld [vmem:[%s1324 + $0x8] sm:$0xf]
      %v1328 = vld [vmem:[%s1324 + $0xc] sm:$0xf]
      %v1329 = vld [vmem:[%s1324 + $0x10] sm:$0xf]
      %v1330 = vld [vmem:[%s1324 + $0x14] sm:$0xf]
      %v1331 = vld [vmem:[%s1324 + $0x18] sm:$0xf]
      %v1332 = vld [vmem:[%s1324 + $0x1c] sm:$0xf]
      %v1333 = vld [vmem:[%s1324 + $0x20] sm:$0xf]
      %v1334 = vld [vmem:[%s1324 + $0x24] sm:$0xf]
      %v1335 = vld [vmem:[%s1324 + $0x28] sm:$0xf]
      %v1336 = vld [vmem:[%s1324 + $0x2c] sm:$0xf]
      %v1337 = vld [vmem:[%s1324 + $0x30] sm:$0xf]
      %v1338 = vld [vmem:[%s1324 + $0x34] sm:$0xf]
      %v1339 = vld [vmem:[%s1324 + $0x38] sm:$0xf]
      %v1340 = vld [vmem:[%s1324 + $0x3c] sm:$0xf]
      %v1341 = vrot.slane %v907, 2
      %v1359 = vunpack.c.l.b16 %v1325
      %v1360 = vunpack.c.l.b16 %v1326
      %v1361 = vunpack.c.l.b16 %v1327
      %v1362 = vunpack.c.l.b16 %v1328
      %v1363 = vunpack.c.l.b16 %v1329
      %v1364 = vunpack.c.l.b16 %v1330
      %v1365 = vunpack.c.l.b16 %v1331
      %v1366 = vunpack.c.l.b16 %v1332
      %v1367 = vunpack.c.l.b16 %v1333
      %v1368 = vunpack.c.l.b16 %v1334
      %v1369 = vunpack.c.l.b16 %v1335
      %v1370 = vunpack.c.l.b16 %v1336
      %v1371 = vunpack.c.l.b16 %v1337
      %v1372 = vunpack.c.l.b16 %v1338
      %v1373 = vunpack.c.l.b16 %v1339
      %v1374 = vunpack.c.l.b16 %v1340
      %v1375 = vpack.c.b16 %v1360, %v1359
      %v1376 = vpack.c.b16 %v1362, %v1361
      %v1377 = vpack.c.b16 %v1364, %v1363
      %v1378 = vpack.c.b16 %v1366, %v1365
      %v1379 = vpack.c.b16 %v1368, %v1367
      %v1380 = vpack.c.b16 %v1370, %v1369
      %v1381 = vpack.c.b16 %v1372, %v1371
      %v1382 = vpack.c.b16 %v1374, %v1373
      %1391 = vmatprep.subr.bf16.mxu0 0
      %1392 = vmatpush1.bf16.msra.mxu0 %v1382
      %1393 = vmatprep.subr.bf16.mxu0 0
      %1394 = vmatpush1.bf16.msra.mxu0 %v1381
      %1395 = vmatprep.subr.bf16.mxu0 0
      %1396 = vmatpush1.bf16.msra.mxu0 %v1380
      %1397 = vmatprep.subr.bf16.mxu0 0
      %1398 = vmatpush1.bf16.msra.mxu0 %v1379
      %1399 = vmatprep.subr.bf16.mxu0 0
      %1400 = vmatpush1.bf16.msra.mxu0 %v1378
      %1401 = vmatprep.subr.bf16.mxu0 0
      %1402 = vmatpush1.bf16.msra.mxu0 %v1377
      %1403 = vmatprep.subr.bf16.mxu0 0
      %1404 = vmatpush1.bf16.msra.mxu0 %v1376
      %1405 = vmatprep.subr.bf16.mxu0 0
      %1406 = vmatpush1.bf16.msra.mxu0 %v1375
      %1407 = vmatprep.subr.bf16.mxu0 0
      %1408 = vmatpush2.bf16.msra.mxu0 0
      %1409 = vmatprep.subr.bf16.mxu0 0
      %1410 = vmatpush2.bf16.msra.mxu0 0
      %1411 = vmatprep.subr.bf16.mxu0 0
      %1412 = vmatpush2.bf16.msra.mxu0 0
      %1413 = vmatprep.subr.bf16.mxu0 0
      %1414 = vmatpush2.bf16.msra.mxu0 0
      %1415 = vmatprep.subr.bf16.mxu0 0
      %1416 = vmatpush2.bf16.msra.mxu0 0
      %1417 = vmatprep.subr.bf16.mxu0 0
      %1418 = vmatpush2.bf16.msra.mxu0 0
      %1419 = vmatprep.subr.bf16.mxu0 0
      %1420 = vmatpush2.bf16.msra.mxu0 0
      %1421 = vmatprep.subr.bf16.mxu0 0
      %1422 = vmatpush2.bf16.msra.mxu0 0
      %1423 = vmatprep.mubr.bf16.mxu0 0
      %1424 = vmatmul.mubr.bf16.gmra.mxu0 %v1341
      %v1425 = vpop.f32.mrf.mxu0
      %v1426 = vadd.f32 0.0, %v1425
      %v1427 = vpop.f32.mrf.mxu0
      %v1428 = vpop.f32.mrf.mxu0
      %v1429 = vpop.f32.mrf.mxu0
      %1430 = vdwg.mxu0
      %v1431 = vadd.f32 %v1323, %v1426
      %s1432 = scalar_lea.vmem %s3, 384
      %v1433 = vld [vmem:[%s1432] sm:$0xf]
      %v1434 = vld [vmem:[%s1432 + $0x4] sm:$0xf]
      %v1435 = vld [vmem:[%s1432 + $0x8] sm:$0xf]
      %v1436 = vld [vmem:[%s1432 + $0xc] sm:$0xf]
      %v1437 = vld [vmem:[%s1432 + $0x10] sm:$0xf]
      %v1438 = vld [vmem:[%s1432 + $0x14] sm:$0xf]
      %v1439 = vld [vmem:[%s1432 + $0x18] sm:$0xf]
      %v1440 = vld [vmem:[%s1432 + $0x1c] sm:$0xf]
      %v1441 = vld [vmem:[%s1432 + $0x20] sm:$0xf]
      %v1442 = vld [vmem:[%s1432 + $0x24] sm:$0xf]
      %v1443 = vld [vmem:[%s1432 + $0x28] sm:$0xf]
      %v1444 = vld [vmem:[%s1432 + $0x2c] sm:$0xf]
      %v1445 = vld [vmem:[%s1432 + $0x30] sm:$0xf]
      %v1446 = vld [vmem:[%s1432 + $0x34] sm:$0xf]
      %v1447 = vld [vmem:[%s1432 + $0x38] sm:$0xf]
      %v1448 = vld [vmem:[%s1432 + $0x3c] sm:$0xf]
      %v1449 = vrot.slane %v783, 3
      %v1467 = vunpack.c.l.b16 %v1433
      %v1468 = vunpack.c.l.b16 %v1434
      %v1469 = vunpack.c.l.b16 %v1435
      %v1470 = vunpack.c.l.b16 %v1436
      %v1471 = vunpack.c.l.b16 %v1437
      %v1472 = vunpack.c.l.b16 %v1438
      %v1473 = vunpack.c.l.b16 %v1439
      %v1474 = vunpack.c.l.b16 %v1440
      %v1475 = vunpack.c.l.b16 %v1441
      %v1476 = vunpack.c.l.b16 %v1442
      %v1477 = vunpack.c.l.b16 %v1443
      %v1478 = vunpack.c.l.b16 %v1444
      %v1479 = vunpack.c.l.b16 %v1445
      %v1480 = vunpack.c.l.b16 %v1446
      %v1481 = vunpack.c.l.b16 %v1447
      %v1482 = vunpack.c.l.b16 %v1448
      %v1483 = vpack.c.b16 %v1468, %v1467
      %v1484 = vpack.c.b16 %v1470, %v1469
      %v1485 = vpack.c.b16 %v1472, %v1471
      %v1486 = vpack.c.b16 %v1474, %v1473
      %v1487 = vpack.c.b16 %v1476, %v1475
      %v1488 = vpack.c.b16 %v1478, %v1477
      %v1489 = vpack.c.b16 %v1480, %v1479
      %v1490 = vpack.c.b16 %v1482, %v1481
      %1499 = vmatprep.subr.bf16.mxu0 0
      %1500 = vmatpush1.bf16.msra.mxu0 %v1490
      %1501 = vmatprep.subr.bf16.mxu0 0
      %1502 = vmatpush1.bf16.msra.mxu0 %v1489
      %1503 = vmatprep.subr.bf16.mxu0 0
      %1504 = vmatpush1.bf16.msra.mxu0 %v1488
      %1505 = vmatprep.subr.bf16.mxu0 0
      %1506 = vmatpush1.bf16.msra.mxu0 %v1487
      %1507 = vmatprep.subr.bf16.mxu0 0
      %1508 = vmatpush1.bf16.msra.mxu0 %v1486
      %1509 = vmatprep.subr.bf16.mxu0 0
      %1510 = vmatpush1.bf16.msra.mxu0 %v1485
      %1511 = vmatprep.subr.bf16.mxu0 0
      %1512 = vmatpush1.bf16.msra.mxu0 %v1484
      %1513 = vmatprep.subr.bf16.mxu0 0
      %1514 = vmatpush1.bf16.msra.mxu0 %v1483
      %1515 = vmatprep.subr.bf16.mxu0 0
      %1516 = vmatpush2.bf16.msra.mxu0 0
      %1517 = vmatprep.subr.bf16.mxu0 0
      %1518 = vmatpush2.bf16.msra.mxu0 0
      %1519 = vmatprep.subr.bf16.mxu0 0
      %1520 = vmatpush2.bf16.msra.mxu0 0
      %1521 = vmatprep.subr.bf16.mxu0 0
      %1522 = vmatpush2.bf16.msra.mxu0 0
      %1523 = vmatprep.subr.bf16.mxu0 0
      %1524 = vmatpush2.bf16.msra.mxu0 0
      %1525 = vmatprep.subr.bf16.mxu0 0
      %1526 = vmatpush2.bf16.msra.mxu0 0
      %1527 = vmatprep.subr.bf16.mxu0 0
      %1528 = vmatpush2.bf16.msra.mxu0 0
      %1529 = vmatprep.subr.bf16.mxu0 0
      %1530 = vmatpush2.bf16.msra.mxu0 0
      %1531 = vmatprep.mubr.bf16.mxu0 0
      %1532 = vmatmul.mubr.bf16.gmra.mxu0 %v1449
      %v1533 = vpop.f32.mrf.mxu0
      %v1534 = vadd.f32 0.0, %v1533
      %v1535 = vpop.f32.mrf.mxu0
      %v1536 = vpop.f32.mrf.mxu0
      %v1537 = vpop.f32.mrf.mxu0
      %1538 = vdwg.mxu0
      %v1539 = vadd.f32 %v1431, %v1534
      %s1540 = scalar_lea.vmem %s3, 448
      %v1541 = vld [vmem:[%s1540] sm:$0xf]
      %v1542 = vld [vmem:[%s1540 + $0x4] sm:$0xf]
      %v1543 = vld [vmem:[%s1540 + $0x8] sm:$0xf]
      %v1544 = vld [vmem:[%s1540 + $0xc] sm:$0xf]
      %v1545 = vld [vmem:[%s1540 + $0x10] sm:$0xf]
      %v1546 = vld [vmem:[%s1540 + $0x14] sm:$0xf]
      %v1547 = vld [vmem:[%s1540 + $0x18] sm:$0xf]
      %v1548 = vld [vmem:[%s1540 + $0x1c] sm:$0xf]
      %v1549 = vld [vmem:[%s1540 + $0x20] sm:$0xf]
      %v1550 = vld [vmem:[%s1540 + $0x24] sm:$0xf]
      %v1551 = vld [vmem:[%s1540 + $0x28] sm:$0xf]
      %v1552 = vld [vmem:[%s1540 + $0x2c] sm:$0xf]
      %v1553 = vld [vmem:[%s1540 + $0x30] sm:$0xf]
      %v1554 = vld [vmem:[%s1540 + $0x34] sm:$0xf]
      %v1555 = vld [vmem:[%s1540 + $0x38] sm:$0xf]
      %v1556 = vld [vmem:[%s1540 + $0x3c] sm:$0xf]
      %v1557 = vrot.slane %v907, 3
      %v1575 = vunpack.c.l.b16 %v1541
      %v1576 = vunpack.c.l.b16 %v1542
      %v1577 = vunpack.c.l.b16 %v1543
      %v1578 = vunpack.c.l.b16 %v1544
      %v1579 = vunpack.c.l.b16 %v1545
      %v1580 = vunpack.c.l.b16 %v1546
      %v1581 = vunpack.c.l.b16 %v1547
      %v1582 = vunpack.c.l.b16 %v1548
      %v1583 = vunpack.c.l.b16 %v1549
      %v1584 = vunpack.c.l.b16 %v1550
      %v1585 = vunpack.c.l.b16 %v1551
      %v1586 = vunpack.c.l.b16 %v1552
      %v1587 = vunpack.c.l.b16 %v1553
      %v1588 = vunpack.c.l.b16 %v1554
      %v1589 = vunpack.c.l.b16 %v1555
      %v1590 = vunpack.c.l.b16 %v1556
      %v1591 = vpack.c.b16 %v1576, %v1575
      %v1592 = vpack.c.b16 %v1578, %v1577
      %v1593 = vpack.c.b16 %v1580, %v1579
      %v1594 = vpack.c.b16 %v1582, %v1581
      %v1595 = vpack.c.b16 %v1584, %v1583
      %v1596 = vpack.c.b16 %v1586, %v1585
      %v1597 = vpack.c.b16 %v1588, %v1587
      %v1598 = vpack.c.b16 %v1590, %v1589
      %1607 = vmatprep.subr.bf16.mxu0 0
      %1608 = vmatpush1.bf16.msra.mxu0 %v1598
      %1609 = vmatprep.subr.bf16.mxu0 0
      %1610 = vmatpush1.bf16.msra.mxu0 %v1597
      %1611 = vmatprep.subr.bf16.mxu0 0
      %1612 = vmatpush1.bf16.msra.mxu0 %v1596
      %1613 = vmatprep.subr.bf16.mxu0 0
      %1614 = vmatpush1.bf16.msra.mxu0 %v1595
      %1615 = vmatprep.subr.bf16.mxu0 0
      %1616 = vmatpush1.bf16.msra.mxu0 %v1594
      %1617 = vmatprep.subr.bf16.mxu0 0
      %1618 = vmatpush1.bf16.msra.mxu0 %v1593
      %1619 = vmatprep.subr.bf16.mxu0 0
      %1620 = vmatpush1.bf16.msra.mxu0 %v1592
      %1621 = vmatprep.subr.bf16.mxu0 0
      %1622 = vmatpush1.bf16.msra.mxu0 %v1591
      %1623 = vmatprep.subr.bf16.mxu0 0
      %1624 = vmatpush2.bf16.msra.mxu0 0
      %1625 = vmatprep.subr.bf16.mxu0 0
      %1626 = vmatpush2.bf16.msra.mxu0 0
      %1627 = vmatprep.subr.bf16.mxu0 0
      %1628 = vmatpush2.bf16.msra.mxu0 0
      %1629 = vmatprep.subr.bf16.mxu0 0
      %1630 = vmatpush2.bf16.msra.mxu0 0
      %1631 = vmatprep.subr.bf16.mxu0 0
      %1632 = vmatpush2.bf16.msra.mxu0 0
      %1633 = vmatprep.subr.bf16.mxu0 0
      %1634 = vmatpush2.bf16.msra.mxu0 0
      %1635 = vmatprep.subr.bf16.mxu0 0
      %1636 = vmatpush2.bf16.msra.mxu0 0
      %1637 = vmatprep.subr.bf16.mxu0 0
      %1638 = vmatpush2.bf16.msra.mxu0 0
      %1639 = vmatprep.mubr.bf16.mxu0 0
      %1640 = vmatmul.mubr.bf16.gmra.mxu0 %v1557
      %v1641 = vpop.f32.mrf.mxu0
      %v1642 = vadd.f32 0.0, %v1641
      %v1643 = vpop.f32.mrf.mxu0
      %v1644 = vpop.f32.mrf.mxu0
      %v1645 = vpop.f32.mrf.mxu0
      %1646 = vdwg.mxu0
      %v1647 = vadd.f32 %v1539, %v1642
      %v1648 = vpack.c.bf16 %v781, %v781
      %s1649 = scalar_lea.vmem %s3, 512
      %v1650 = vld [vmem:[%s1649] sm:$0xf]
      %v1651 = vld [vmem:[%s1649 + $0x4] sm:$0xf]
      %v1652 = vld [vmem:[%s1649 + $0x8] sm:$0xf]
      %v1653 = vld [vmem:[%s1649 + $0xc] sm:$0xf]
      %v1654 = vld [vmem:[%s1649 + $0x10] sm:$0xf]
      %v1655 = vld [vmem:[%s1649 + $0x14] sm:$0xf]
      %v1656 = vld [vmem:[%s1649 + $0x18] sm:$0xf]
      %v1657 = vld [vmem:[%s1649 + $0x1c] sm:$0xf]
      %v1658 = vld [vmem:[%s1649 + $0x20] sm:$0xf]
      %v1659 = vld [vmem:[%s1649 + $0x24] sm:$0xf]
      %v1660 = vld [vmem:[%s1649 + $0x28] sm:$0xf]
      %v1661 = vld [vmem:[%s1649 + $0x2c] sm:$0xf]
      %v1662 = vld [vmem:[%s1649 + $0x30] sm:$0xf]
      %v1663 = vld [vmem:[%s1649 + $0x34] sm:$0xf]
      %v1664 = vld [vmem:[%s1649 + $0x38] sm:$0xf]
      %v1665 = vld [vmem:[%s1649 + $0x3c] sm:$0xf]
      %v1682 = vunpack.c.l.b16 %v1650
      %v1683 = vunpack.c.l.b16 %v1651
      %v1684 = vunpack.c.l.b16 %v1652
      %v1685 = vunpack.c.l.b16 %v1653
      %v1686 = vunpack.c.l.b16 %v1654
      %v1687 = vunpack.c.l.b16 %v1655
      %v1688 = vunpack.c.l.b16 %v1656
      %v1689 = vunpack.c.l.b16 %v1657
      %v1690 = vunpack.c.l.b16 %v1658
      %v1691 = vunpack.c.l.b16 %v1659
      %v1692 = vunpack.c.l.b16 %v1660
      %v1693 = vunpack.c.l.b16 %v1661
      %v1694 = vunpack.c.l.b16 %v1662
      %v1695 = vunpack.c.l.b16 %v1663
      %v1696 = vunpack.c.l.b16 %v1664
      %v1697 = vunpack.c.l.b16 %v1665
      %v1698 = vpack.c.b16 %v1683, %v1682
      %v1699 = vpack.c.b16 %v1685, %v1684
      %v1700 = vpack.c.b16 %v1687, %v1686
      %v1701 = vpack.c.b16 %v1689, %v1688
      %v1702 = vpack.c.b16 %v1691, %v1690
      %v1703 = vpack.c.b16 %v1693, %v1692
      %v1704 = vpack.c.b16 %v1695, %v1694
      %v1705 = vpack.c.b16 %v1697, %v1696
      %1714 = vmatprep.subr.bf16.mxu0 0
      %1715 = vmatpush1.bf16.msra.mxu0 %v1705
      %1716 = vmatprep.subr.bf16.mxu0 0
      %1717 = vmatpush1.bf16.msra.mxu0 %v1704
      %1718 = vmatprep.subr.bf16.mxu0 0
      %1719 = vmatpush1.bf16.msra.mxu0 %v1703
      %1720 = vmatprep.subr.bf16.mxu0 0
      %1721 = vmatpush1.bf16.msra.mxu0 %v1702
      %1722 = vmatprep.subr.bf16.mxu0 0
      %1723 = vmatpush1.bf16.msra.mxu0 %v1701
      %1724 = vmatprep.subr.bf16.mxu0 0
      %1725 = vmatpush1.bf16.msra.mxu0 %v1700
      %1726 = vmatprep.subr.bf16.mxu0 0
      %1727 = vmatpush1.bf16.msra.mxu0 %v1699
      %1728 = vmatprep.subr.bf16.mxu0 0
      %1729 = vmatpush1.bf16.msra.mxu0 %v1698
      %1730 = vmatprep.subr.bf16.mxu0 0
      %1731 = vmatpush2.bf16.msra.mxu0 0
      %1732 = vmatprep.subr.bf16.mxu0 0
      %1733 = vmatpush2.bf16.msra.mxu0 0
      %1734 = vmatprep.subr.bf16.mxu0 0
      %1735 = vmatpush2.bf16.msra.mxu0 0
      %1736 = vmatprep.subr.bf16.mxu0 0
      %1737 = vmatpush2.bf16.msra.mxu0 0
      %1738 = vmatprep.subr.bf16.mxu0 0
      %1739 = vmatpush2.bf16.msra.mxu0 0
      %1740 = vmatprep.subr.bf16.mxu0 0
      %1741 = vmatpush2.bf16.msra.mxu0 0
      %1742 = vmatprep.subr.bf16.mxu0 0
      %1743 = vmatpush2.bf16.msra.mxu0 0
      %1744 = vmatprep.subr.bf16.mxu0 0
      %1745 = vmatpush2.bf16.msra.mxu0 0
      %1746 = vmatprep.mubr.bf16.mxu0 0
      %1747 = vmatmul.mubr.bf16.gmra.mxu0 %v1648
      %v1748 = vpop.f32.mrf.mxu0
      %v1749 = vadd.f32 0.0, %v1748
      %v1750 = vpop.f32.mrf.mxu0
      %v1751 = vpop.f32.mrf.mxu0
      %v1752 = vpop.f32.mrf.mxu0
      %1753 = vdwg.mxu0
      %v1754 = vadd.f32 %v1647, %v1749
      %v1755 = vmax.f32 %v1754, 0.0
      %v1756 = vpack.c.bf16 %v1755, %v1755
      %v1757 = vld [vmem:[%s5] sm:$0xf]
      %v1758 = vld [vmem:[%s5 + $0x4] sm:$0xf]
      %v1759 = vld [vmem:[%s5 + $0x8] sm:$0xf]
      %v1760 = vld [vmem:[%s5 + $0xc] sm:$0xf]
      %v1761 = vld [vmem:[%s5 + $0x10] sm:$0xf]
      %v1762 = vld [vmem:[%s5 + $0x14] sm:$0xf]
      %v1763 = vld [vmem:[%s5 + $0x18] sm:$0xf]
      %v1764 = vld [vmem:[%s5 + $0x1c] sm:$0xf]
      %v1765 = vld [vmem:[%s5 + $0x20] sm:$0xf]
      %v1766 = vld [vmem:[%s5 + $0x24] sm:$0xf]
      %v1767 = vld [vmem:[%s5 + $0x28] sm:$0xf]
      %v1768 = vld [vmem:[%s5 + $0x2c] sm:$0xf]
      %v1769 = vld [vmem:[%s5 + $0x30] sm:$0xf]
      %v1770 = vld [vmem:[%s5 + $0x34] sm:$0xf]
      %v1771 = vld [vmem:[%s5 + $0x38] sm:$0xf]
      %v1772 = vld [vmem:[%s5 + $0x3c] sm:$0xf]
      %v1773 = vld [vmem:[%s6] sm:$0x1]
      %v1790 = vunpack.c.l.b16 %v1757
      %v1791 = vunpack.c.l.b16 %v1758
      %v1792 = vunpack.c.l.b16 %v1759
      %v1793 = vunpack.c.l.b16 %v1760
      %v1794 = vunpack.c.l.b16 %v1761
      %v1795 = vunpack.c.l.b16 %v1762
      %v1796 = vunpack.c.l.b16 %v1763
      %v1797 = vunpack.c.l.b16 %v1764
      %v1798 = vunpack.c.l.b16 %v1765
      %v1799 = vunpack.c.l.b16 %v1766
      %v1800 = vunpack.c.l.b16 %v1767
      %v1801 = vunpack.c.l.b16 %v1768
      %v1802 = vunpack.c.l.b16 %v1769
      %v1803 = vunpack.c.l.b16 %v1770
      %v1804 = vunpack.c.l.b16 %v1771
      %v1805 = vunpack.c.l.b16 %v1772
      %v1806 = vpack.c.b16 %v1791, %v1790
      %v1807 = vpack.c.b16 %v1793, %v1792
      %v1808 = vpack.c.b16 %v1795, %v1794
      %v1809 = vpack.c.b16 %v1797, %v1796
      %v1810 = vpack.c.b16 %v1799, %v1798
      %v1811 = vpack.c.b16 %v1801, %v1800
      %v1812 = vpack.c.b16 %v1803, %v1802
      %v1813 = vpack.c.b16 %v1805, %v1804
      %1822 = vmatprep.subr.bf16.mxu0 0
      %1823 = vmatpush1.bf16.msra.mxu0 %v1813
      %1824 = vmatprep.subr.bf16.mxu0 0
      %1825 = vmatpush1.bf16.msra.mxu0 %v1812
      %1826 = vmatprep.subr.bf16.mxu0 0
      %1827 = vmatpush1.bf16.msra.mxu0 %v1811
      %1828 = vmatprep.subr.bf16.mxu0 0
      %1829 = vmatpush1.bf16.msra.mxu0 %v1810
      %1830 = vmatprep.subr.bf16.mxu0 0
      %1831 = vmatpush1.bf16.msra.mxu0 %v1809
      %1832 = vmatprep.subr.bf16.mxu0 0
      %1833 = vmatpush1.bf16.msra.mxu0 %v1808
      %1834 = vmatprep.subr.bf16.mxu0 0
      %1835 = vmatpush1.bf16.msra.mxu0 %v1807
      %1836 = vmatprep.subr.bf16.mxu0 0
      %1837 = vmatpush1.bf16.msra.mxu0 %v1806
      %1838 = vmatprep.subr.bf16.mxu0 0
      %1839 = vmatpush2.bf16.msra.mxu0 0
      %1840 = vmatprep.subr.bf16.mxu0 0
      %1841 = vmatpush2.bf16.msra.mxu0 0
      %1842 = vmatprep.subr.bf16.mxu0 0
      %1843 = vmatpush2.bf16.msra.mxu0 0
      %1844 = vmatprep.subr.bf16.mxu0 0
      %1845 = vmatpush2.bf16.msra.mxu0 0
      %1846 = vmatprep.subr.bf16.mxu0 0
      %1847 = vmatpush2.bf16.msra.mxu0 0
      %1848 = vmatprep.subr.bf16.mxu0 0
      %1849 = vmatpush2.bf16.msra.mxu0 0
      %1850 = vmatprep.subr.bf16.mxu0 0
      %1851 = vmatpush2.bf16.msra.mxu0 0
      %1852 = vmatprep.subr.bf16.mxu0 0
      %1853 = vmatpush2.bf16.msra.mxu0 0
      %1854 = vmatprep.mubr.bf16.mxu0 0
      %1855 = vmatmul.mubr.bf16.gmra.mxu0 %v1756
      %v1856 = vpop.f32.mrf.mxu0
      %v1857 = vadd.f32 %v1773, %v1856
      %v1858 = vpop.f32.mrf.mxu0
      %v1859 = vpop.f32.mrf.mxu0
      %v1860 = vpop.f32.mrf.mxu0
      %1861 = vdwg.mxu0
      %v1862 = vlaneseq
      %v1863 = vshrl.u32 %v1862, 7
      %v1864 = vsub.s32 0, %v1863
      %v1865 = vrot.slane %v1857, %v1864
      %1866 = vst [vmem:[%s276] sm:$0xff] %v1865
      %p1867 = scmp.lt.s32.totalorder %s18, 1
      %s1868 = scalar_select %p1867, %s18, 1
      %s1869 = smul.addr %s1868, 8
      %s1870 = scalar_lea.vmem %s7, %s1869
      // Predicated region
      $region49: #{neuralnet_forward.3} parent=47 // pred_check
        %p1871 = pneg %p188
      $region50: #{neuralnet_forward.3} parent=47 // pred_check_branch
        %1873 = sbr.rel (%p1871) target = $region52
      $region51: #{neuralnet_forward.3} parent=47 // pred_region
        _
      $region52: #{neuralnet_forward.3} parent=47 // pred_fallthru
        _
    $region48: #{neuralnet_forward.3} parent=5 // pred_fallthru
      _
    %p1874 = scmp.le.s32.totalorder 2, %s13
    // Predicated region
    $region53: #{neuralnet_forward.3} parent=5 // pred_check
      %p1875 = pneg %p1874
    $region54: #{neuralnet_forward.3} parent=5 // pred_check_branch
      %1877 = sbr.rel (%p1875) target = $region56
    $region55: #{neuralnet_forward.3} parent=5 // pred_region
      %s1878 = ssub.s32 %s13, 2
      // Predicated region
      $region57: #{neuralnet_forward.3} parent=55 // pred_check
        %p1879 = pneg %p194
      $region58: #{neuralnet_forward.3} parent=55 // pred_check_branch
        %1881 = sbr.rel (%p1879) target = $region60
      $region59: #{neuralnet_forward.3} parent=55 // pred_region
        %p1882 = scmp.lt.s32.totalorder %s19, 1
        %s1883 = scalar_select %p1882, %s19, 1
        %s1884 = smul.addr %s1883, 8
        %s1885 = scalar_lea.vmem %s7, %s1884
      $region60: #{neuralnet_forward.3} parent=55 // pred_fallthru
        _
    $region56: #{neuralnet_forward.3} parent=5 // pred_fallthru
      _
  $region6: #{neuralnet_forward.3} parent=0 // loop_footer
    %s17 = sadd.s32 1, %s13
  $region7: #{neuralnet_forward.3} parent=0 // loop_footer_branch
    %12 = sbr.rel target = $region3
  $region8: #{neuralnet_forward.3} parent=0 // loop_exit
    _

</llo_original>
